<compile_context>
chip_gen: v6e
topology: v6e:2x2x1
jax: 0.10.0
libtpu: 0.0.40
codegen_flags: <defaults>
</compile_context>

<pallas_src>
import jax
import jax.numpy as jnp
from jax.experimental import pallas as pl
from jax.experimental.pallas import tpu as pltpu


def _round_up(x, m):
    return (x + m - 1) // m * m


def _alignment_kernel(crit_ref, ehr_ref, cmask_ref, emask_ref,
                      wa_ref, ba_ref, wrc_ref, wrs_ref, br_ref,
                      wm_ref, bm_ref, wo_ref, bo_ref,
                      out_ref):
    Bt, Lc, Dp = crit_ref.shape
    _, Le, _ = ehr_ref.shape

    crit = crit_ref[...]                      # (Bt, Lc, Dp) f32 (zero-padded lanes)
    ehr = ehr_ref[...]                        # (Bt, Le, Dp)
    wa = wa_ref[...]                          # (Dp, Dp)
    ba = ba_ref[...]                          # (1, Dp)

    # ---- shared align_mapping + relu ---------------------------------------
    # Dp is a multiple of 128, so the (Bt,L,Dp) <-> (Bt*L,Dp) merges below are
    # layout-preserving (they do not cross (8,128) tile boundaries).
    crit2 = crit.reshape(Bt * Lc, Dp)
    ehr2 = ehr.reshape(Bt * Le, Dp)
    a3 = jnp.maximum(
        jnp.dot(crit2, wa, preferred_element_type=jnp.float32) + ba,
        0.0).reshape(Bt, Lc, Dp)
    e3 = jnp.maximum(
        jnp.dot(ehr2, wa, preferred_element_type=jnp.float32) + ba,
        0.0).reshape(Bt, Le, Dp)

    # bf16 MXU operands for the quadratic (L^2) einsums; f32 accumulation.
    a3b = a3.astype(jnp.bfloat16)
    e3b = e3.astype(jnp.bfloat16)

    # Alignment logits in BOTH layouts via two MXU bmms.  Producing the
    # transposed logits on the MXU (instead of transposing beta later) keeps
    # the ctx_e contraction in standard last-axis matmul form (no XLU vxpose).
    align = jnp.einsum('bqd,bkd->bqk', a3b, e3b,
                       preferred_element_type=jnp.float32)      # (Bt, Lc, Le)
    alignT = jnp.einsum('bkd,bqd->bkq', e3b, a3b,
                        preferred_element_type=jnp.float32)     # (Bt, Le, Lc)

    # Hoisted mask biases (same -1e9 trick as the PyTorch module).
    cbias = (cmask_ref[...] - 1.0) * 1e9                        # (Bt, 1, Lc)
    ebias = (emask_ref[...] - 1.0) * 1e9                        # (Bt, 1, Le)

    # alpha: softmax over Le (lane axis of `align`), ehr-mask bias.
    la = align + ebias
    la = la - jnp.max(la, axis=-1, keepdims=True)
    ea = jnp.exp(la)
    alpha = ea * pl.reciprocal(jnp.sum(ea, axis=-1, keepdims=True), approx=True)

    # beta, stored transposed: softmax over Lc (lane axis of `alignT`),
    # criteria-mask bias.  betaT[b,k,q] == beta[b,q,k] of the PyTorch module.
    lb = alignT + cbias
    lb = lb - jnp.max(lb, axis=-1, keepdims=True)
    eb = jnp.exp(lb)
    betaT = eb * pl.reciprocal(jnp.sum(eb, axis=-1, keepdims=True), approx=True)

    # ---- attention-weighted contexts ---------------------------------------
    # TODO(synk): for large Lc/Le, tile these with an online (flash-style)
    # softmax so the (Bt,Lc,Le) temporaries never live at full size in VMEM
    # (required on v7x's 64 MiB VMEM at long sequence lengths).
    critb = crit.astype(jnp.bfloat16)
    ehrb = ehr.astype(jnp.bfloat16)
    ctx_c = jnp.einsum('bqk,bkd->bqd', alpha.astype(jnp.bfloat16), ehrb,
                       preferred_element_type=jnp.float32)      # (Bt, Lc, Dp)
    ctx_e = jnp.einsum('bkq,bqd->bkd', betaT.astype(jnp.bfloat16), critb,
                       preferred_element_type=jnp.float32)      # (Bt, Le, Dp)

    # ---- r_mapping + relu (concat folded into the split weight) ------------
    wrc = wrc_ref[...]                        # (Dp, Dp)  rows for the ctx half
    wrs = wrs_ref[...]                        # (Dp, Dp)  rows for the self half
    br = br_ref[...]                          # (1, Dp)
    pre1 = jnp.maximum(
        jnp.dot(ctx_c.reshape(Bt * Lc, Dp), wrc, preferred_element_type=jnp.float32)
        + jnp.dot(crit2, wrs, preferred_element_type=jnp.float32)
        + br, 0.0).reshape(Bt, Lc, Dp)
    pre2 = jnp.maximum(
        jnp.dot(ctx_e.reshape(Bt * Le, Dp), wrc, preferred_element_type=jnp.float32)
        + jnp.dot(ehr2, wrs, preferred_element_type=jnp.float32)
        + br, 0.0).reshape(Bt, Le, Dp)

    # ---- sequence sums on the MXU (ones-matmul) instead of an XLU sublane
    # reduction.  Padded sequence positions are included on purpose (matches
    # the PyTorch module's semantics).
    ones_c = jnp.ones((Bt, 1, Lc), jnp.float32)
    ones_e = jnp.ones((Bt, 1, Le), jnp.float32)
    r1 = jnp.einsum('bql,bld->bqd', ones_c, pre1,
                    preferred_element_type=jnp.float32).reshape(Bt, Dp)
    r2 = jnp.einsum('bql,bld->bqd', ones_e, pre2,
                    preferred_element_type=jnp.float32).reshape(Bt, Dp)

    # ---- MLP head (tiny per-sample vectors; kept in f32) --------------------
    m = jnp.concatenate([r1, r2, r1 * r2, r1 - r2], axis=-1)    # (Bt, 4*Dp)
    h = jnp.maximum(
        jnp.dot(m, wm_ref[...], preferred_element_type=jnp.float32) + bm_ref[...],
        0.0)                                                    # (Bt, Mp)
    out = jnp.dot(h, wo_ref[...], preferred_element_type=jnp.float32) + bo_ref[...]
    # Lane-dense store of the padded (Bt, 1, 128) result; wrapper slices to 3.
    out_ref[...] = out.reshape(Bt, 1, out_ref.shape[-1])


def alignment_forward(criteria, ehr, criteria_mask, ehr_mask, params,
                      *, batch_tile=None, vmem_limit_bytes=None):
    B, Lc, D = criteria.shape
    _, Le, _ = ehr.shape
    M = params['w_mlp'].shape[1]

    Dp = _round_up(D, 128)
    Mp = _round_up(M, 128)
    OUTP = 128   # lane-dense padded output width (real width is 3)

    if batch_tile is None:
        batch_tile = 1
        for cand in (8, 4, 2, 1):
            if B % cand == 0:
                batch_tile = cand
                break
    assert B % batch_tile == 0, "batch_tile must divide the batch size"
    bt = batch_tile
    grid = (B // bt,)

    f32 = jnp.float32

    def pad2(x, r, c):
        x = x.astype(f32)
        return jnp.pad(x, ((0, r - x.shape[0]), (0, c - x.shape[1])))

    # ---- pad parameters to lane-dense shapes (zero padding; exact) ----------
    wa = pad2(params['w_align'], Dp, Dp)
    ba = pad2(params['b_align'], 1, Dp)
    wr = params['w_r'].astype(f32)
    wrc = pad2(wr[:D], Dp, Dp)                 # ctx half of the concat weight
    wrs = pad2(wr[D:], Dp, Dp)                 # self half of the concat weight
    br = pad2(params['b_r'], 1, Dp)
    wm4 = params['w_mlp'].astype(f32).reshape(4, D, M)
    wm = jnp.pad(wm4, ((0, 0), (0, Dp - D), (0, Mp - M))).reshape(4 * Dp, Mp)
    bm = pad2(params['b_mlp'], 1, Mp)
    wo = pad2(params['w_out'], Mp, OUTP)
    bo = pad2(params['b_out'], 1, OUTP)

    # ---- pad activations / reshape masks ------------------------------------
    crit = jnp.pad(criteria.astype(f32), ((0, 0), (0, 0), (0, Dp - D)))
    ehr_p = jnp.pad(ehr.astype(f32), ((0, 0), (0, 0), (0, Dp - D)))
    cmask = criteria_mask.astype(f32).reshape(B, 1, Lc)
    emask = ehr_mask.astype(f32).reshape(B, 1, Le)

    data_map = lambda b: (b, 0, 0)
    const2 = lambda b: (0, 0)

    in_specs = [
        pl.BlockSpec((bt, Lc, Dp), data_map),      # criteria
        pl.BlockSpec((bt, Le, Dp), data_map),      # ehr
        pl.BlockSpec((bt, 1, Lc), data_map),       # criteria mask
        pl.BlockSpec((bt, 1, Le), data_map),       # ehr mask
        pl.BlockSpec((Dp, Dp), const2),            # w_align (VMEM-resident)
        pl.BlockSpec((1, Dp), const2),             # b_align
        pl.BlockSpec((Dp, Dp), const2),            # w_r (ctx half)
        pl.BlockSpec((Dp, Dp), const2),            # w_r (self half)
        pl.BlockSpec((1, Dp), const2),             # b_r
        pl.BlockSpec((4 * Dp, Mp), const2),        # w_mlp
        pl.BlockSpec((1, Mp), const2),             # b_mlp
        pl.BlockSpec((Mp, OUTP), const2),          # w_out
        pl.BlockSpec((1, OUTP), const2),           # b_out
    ]
    out_specs = pl.BlockSpec((bt, 1, OUTP), data_map)

    compiler_params = pltpu.CompilerParams(
        dimension_semantics=("parallel",),          # batch tiles are independent
        vmem_limit_bytes=vmem_limit_bytes)          # raise for big bt*Lc*Le tiles

    out_padded = pl.pallas_call(
        _alignment_kernel,
        out_shape=jax.ShapeDtypeStruct((B, 1, OUTP), jnp.float32),
        grid=grid,
        in_specs=in_specs,
        out_specs=out_specs,
        compiler_params=compiler_params,
    )(crit, ehr_p, cmask, emask, wa, ba, wrc, wrs, br, wm, bm, wo, bo)

    return out_padded[:, 0, :3]


def reference_forward(criteria, ehr, cmask, emask, params):
    """Pure-JAX f32 replica of the PyTorch forward (for verification)."""
    a = jax.nn.relu(criteria @ params['w_align'] + params['b_align'])
    e = jax.nn.relu(ehr @ params['w_align'] + params['b_align'])
    align = jnp.einsum('bqd,bkd->bqk', a, e)
    beta = jax.nn.softmax(align + ((1.0 - cmask) * -1e9)[:, :, None], axis=1)
    alpha = jax.nn.softmax(align + ((1.0 - emask) * -1e9)[:, None, :], axis=2)
    ctx_c = jnp.einsum('bqk,bkd->bqd', alpha, ehr)
    ctx_e = jnp.einsum('bqk,bqd->bkd', beta, criteria)
    r1 = jnp.sum(jax.nn.relu(
        jnp.concatenate([ctx_c, criteria], -1) @ params['w_r'] + params['b_r']), axis=1)
    r2 = jnp.sum(jax.nn.relu(
        jnp.concatenate([ctx_e, ehr], -1) @ params['w_r'] + params['b_r']), axis=1)
    m = jnp.concatenate([r1, r2, r1 * r2, r1 - r2], axis=-1)
    h = jax.nn.relu(m @ params['w_mlp'] + params['b_mlp'])
    return h @ params['w_out'] + params['b_out']


if __name__ == "__main__":
    B, Lc, Le, D, M = 2, 8, 8, 32, 32

    key = jax.random.PRNGKey(0)
    ks = jax.random.split(key, 10)

    criteria = jax.random.normal(ks[0], (B, Lc, D), jnp.float32)
    ehr = jax.random.normal(ks[1], (B, Le, D), jnp.float32)
    # masks: 1.0 = valid token, 0.0 = padding
    criteria_mask = (jnp.arange(Lc)[None, :] < jnp.array([[6], [8]])).astype(jnp.float32)
    ehr_mask = (jnp.arange(Le)[None, :] < jnp.array([[8], [5]])).astype(jnp.float32)

    s = 0.1
    params = {
        'w_align': s * jax.random.normal(ks[2], (D, D), jnp.float32),
        'b_align': s * jax.random.normal(ks[3], (1, D), jnp.float32),
        'w_r':     s * jax.random.normal(ks[4], (2 * D, D), jnp.float32),
        'b_r':     s * jax.random.normal(ks[5], (1, D), jnp.float32),
        'w_mlp':   s * jax.random.normal(ks[6], (4 * D, M), jnp.float32),
        'b_mlp':   s * jax.random.normal(ks[7], (1, M), jnp.float32),
        'w_out':   s * jax.random.normal(ks[8], (M, 3), jnp.float32),
        'b_out':   s * jax.random.normal(ks[9], (1, 3), jnp.float32),
    }

    # batch_tile=1 -> grid of 2 steps (exercises the batch grid / pipelining).
    out = alignment_forward(criteria, ehr, criteria_mask, ehr_mask, params,
                            batch_tile=1)
    jax.block_until_ready(out)

    ref = reference_forward(criteria, ehr, criteria_mask, ehr_mask, params)
    assert out.shape == (B, 3)
    # bf16 MXU operands on the L^2 einsums + approx-reciprocal softmax =>
    # compare against the pure-f32 reference with a mixed-precision tolerance.
    assert jnp.allclose(out, ref, atol=5e-2, rtol=5e-2), (out, ref)

    print("KERNEL_OK")
</pallas_src>

<mosaic_0001>
module attributes {stable_mosaic.version = 11 : i64} {
  func.func @_alignment_kernel(%arg0: i32, %arg1: memref<1x8x128xf32, #tpu.memory_space<vmem>>, %arg2: memref<1x8x128xf32, #tpu.memory_space<vmem>>, %arg3: memref<1x1x8xf32, #tpu.memory_space<vmem>>, %arg4: memref<1x1x8xf32, #tpu.memory_space<vmem>>, %arg5: memref<128x128xf32, #tpu.memory_space<vmem>>, %arg6: memref<1x128xf32, #tpu.memory_space<vmem>>, %arg7: memref<128x128xf32, #tpu.memory_space<vmem>>, %arg8: memref<128x128xf32, #tpu.memory_space<vmem>>, %arg9: memref<1x128xf32, #tpu.memory_space<vmem>>, %arg10: memref<512x128xf32, #tpu.memory_space<vmem>>, %arg11: memref<1x128xf32, #tpu.memory_space<vmem>>, %arg12: memref<128x128xf32, #tpu.memory_space<vmem>>, %arg13: memref<1x128xf32, #tpu.memory_space<vmem>>, %arg14: memref<1x1x128xf32, #tpu.memory_space<vmem>>) attributes {dimension_semantics = [#tpu.dimension_semantics<parallel>], iteration_bounds = array<i64: 2>, scalar_prefetch = 0 : i64, scratch_operands = 0 : i64, tpu.core_type = #tpu.core_type<tc>, window_params = [{transform_indices = @transform_0, window_bounds = array<i64: 1, 8, 128>}, {transform_indices = @transform_1, window_bounds = array<i64: 1, 8, 128>}, {transform_indices = @transform_2, window_bounds = array<i64: 1, 1, 8>}, {transform_indices = @transform_3, window_bounds = array<i64: 1, 1, 8>}, {pipeline_mode = #tpu.pipeline_mode<synchronous>, transform_indices = @transform_4, window_bounds = array<i64: 128, 128>}, {pipeline_mode = #tpu.pipeline_mode<synchronous>, transform_indices = @transform_5, window_bounds = array<i64: 1, 128>}, {pipeline_mode = #tpu.pipeline_mode<synchronous>, transform_indices = @transform_6, window_bounds = array<i64: 128, 128>}, {pipeline_mode = #tpu.pipeline_mode<synchronous>, transform_indices = @transform_7, window_bounds = array<i64: 128, 128>}, {pipeline_mode = #tpu.pipeline_mode<synchronous>, transform_indices = @transform_8, window_bounds = array<i64: 1, 128>}, {pipeline_mode = #tpu.pipeline_mode<synchronous>, transform_indices = @transform_9, window_bounds = array<i64: 512, 128>}, {pipeline_mode = #tpu.pipeline_mode<synchronous>, transform_indices = @transform_10, window_bounds = array<i64: 1, 128>}, {pipeline_mode = #tpu.pipeline_mode<synchronous>, transform_indices = @transform_11, window_bounds = array<i64: 128, 128>}, {pipeline_mode = #tpu.pipeline_mode<synchronous>, transform_indices = @transform_12, window_bounds = array<i64: 1, 128>}, {transform_indices = @transform_13, window_bounds = array<i64: 1, 1, 128>}]} {
    %c0 = arith.constant 0 : index
    %c0_0 = arith.constant 0 : index
    %c0_1 = arith.constant 0 : index
    %0 = vector.load %arg1[%c0, %c0_0, %c0_1] : memref<1x8x128xf32, #tpu.memory_space<vmem>>, vector<1x8x128xf32>
    %c0_2 = arith.constant 0 : index
    %c0_3 = arith.constant 0 : index
    %c0_4 = arith.constant 0 : index
    %1 = vector.load %arg2[%c0_2, %c0_3, %c0_4] : memref<1x8x128xf32, #tpu.memory_space<vmem>>, vector<1x8x128xf32>
    %c0_5 = arith.constant 0 : index
    %c0_6 = arith.constant 0 : index
    %2 = vector.load %arg5[%c0_5, %c0_6] : memref<128x128xf32, #tpu.memory_space<vmem>>, vector<128x128xf32>
    %c0_7 = arith.constant 0 : index
    %c0_8 = arith.constant 0 : index
    %3 = vector.load %arg6[%c0_7, %c0_8] : memref<1x128xf32, #tpu.memory_space<vmem>>, vector<1x128xf32>
    %4 = vector.shape_cast %0 : vector<1x8x128xf32> to vector<8x128xf32>
    %5 = vector.shape_cast %1 : vector<1x8x128xf32> to vector<8x128xf32>
    %cst = arith.constant dense<0.000000e+00> : vector<8x128xf32>
    %6 = tpu.matmul %4, %2, %cst {dimension_numbers = #tpu.dot_dimension_numbers<[1], [0], [0], [1], [0, 0, 1, 1], [], []>} : vector<8x128xf32>, vector<128x128xf32>, vector<8x128xf32> -> vector<8x128xf32>
    %7 = vector.broadcast %3 : vector<1x128xf32> to vector<8x128xf32>
    %8 = arith.addf %6, %7 : vector<8x128xf32>
    %cst_9 = arith.constant 0.000000e+00 : f32
    %9 = vector.broadcast %cst_9 : f32 to vector<8x128xf32>
    %10 = arith.maximumf %8, %9 : vector<8x128xf32>
    %11 = vector.shape_cast %10 : vector<8x128xf32> to vector<1x8x128xf32>
    %cst_10 = arith.constant dense<0.000000e+00> : vector<8x128xf32>
    %12 = tpu.matmul %5, %2, %cst_10 {dimension_numbers = #tpu.dot_dimension_numbers<[1], [0], [0], [1], [0, 0, 1, 1], [], []>} : vector<8x128xf32>, vector<128x128xf32>, vector<8x128xf32> -> vector<8x128xf32>
    %13 = vector.broadcast %3 : vector<1x128xf32> to vector<8x128xf32>
    %14 = arith.addf %12, %13 : vector<8x128xf32>
    %cst_11 = arith.constant 0.000000e+00 : f32
    %15 = vector.broadcast %cst_11 : f32 to vector<8x128xf32>
    %16 = arith.maximumf %14, %15 : vector<8x128xf32>
    %17 = vector.shape_cast %16 : vector<8x128xf32> to vector<1x8x128xf32>
    %18 = arith.truncf %11 : vector<1x8x128xf32> to vector<1x8x128xbf16>
    %19 = arith.truncf %17 : vector<1x8x128xf32> to vector<1x8x128xbf16>
    "tpu.trace_start"() <{level = 10 : i32, message = "bqd,bkd->bqk"}> : () -> ()
    %cst_12 = arith.constant dense<0.000000e+00> : vector<1x8x8xf32>
    %20 = tpu.matmul %18, %19, %cst_12 {dimension_numbers = #tpu.dot_dimension_numbers<[2], [2], [1], [1], [0, 0, 0, 1, 1, 1], [0], [0]>} : vector<1x8x128xbf16>, vector<1x8x128xbf16>, vector<1x8x8xf32> -> vector<1x8x8xf32>
    "tpu.trace_stop"() : () -> ()
    "tpu.trace_start"() <{level = 10 : i32, message = "bkd,bqd->bkq"}> : () -> ()
    %cst_13 = arith.constant dense<0.000000e+00> : vector<1x8x8xf32>
    %21 = tpu.matmul %19, %18, %cst_13 {dimension_numbers = #tpu.dot_dimension_numbers<[2], [2], [1], [1], [0, 0, 0, 1, 1, 1], [0], [0]>} : vector<1x8x128xbf16>, vector<1x8x128xbf16>, vector<1x8x8xf32> -> vector<1x8x8xf32>
    "tpu.trace_stop"() : () -> ()
    %c0_14 = arith.constant 0 : index
    %c0_15 = arith.constant 0 : index
    %c0_16 = arith.constant 0 : index
    %22 = vector.load %arg3[%c0_14, %c0_15, %c0_16] : memref<1x1x8xf32, #tpu.memory_space<vmem>>, vector<1x1x8xf32>
    %cst_17 = arith.constant 1.000000e+00 : f32
    %23 = vector.broadcast %cst_17 : f32 to vector<1x1x8xf32>
    %24 = arith.subf %22, %23 : vector<1x1x8xf32>
    %cst_18 = arith.constant 1.000000e+09 : f32
    %25 = vector.broadcast %cst_18 : f32 to vector<1x1x8xf32>
    %26 = arith.mulf %24, %25 : vector<1x1x8xf32>
    %c0_19 = arith.constant 0 : index
    %c0_20 = arith.constant 0 : index
    %c0_21 = arith.constant 0 : index
    %27 = vector.load %arg4[%c0_19, %c0_20, %c0_21] : memref<1x1x8xf32, #tpu.memory_space<vmem>>, vector<1x1x8xf32>
    %cst_22 = arith.constant 1.000000e+00 : f32
    %28 = vector.broadcast %cst_22 : f32 to vector<1x1x8xf32>
    %29 = arith.subf %27, %28 : vector<1x1x8xf32>
    %cst_23 = arith.constant 1.000000e+09 : f32
    %30 = vector.broadcast %cst_23 : f32 to vector<1x1x8xf32>
    %31 = arith.mulf %29, %30 : vector<1x1x8xf32>
    %32 = vector.broadcast %31 : vector<1x1x8xf32> to vector<1x8x8xf32>
    %33 = arith.addf %20, %32 : vector<1x8x8xf32>
    %cst_24 = arith.constant dense<0xFF800000> : vector<1x8xf32>
    %34 = vector.multi_reduction <maximumf>, %33, %cst_24 [2] : vector<1x8x8xf32> to vector<1x8xf32>
    %35 = vector.shape_cast %34 : vector<1x8xf32> to vector<1x8x1xf32>
    %36 = vector.broadcast %35 : vector<1x8x1xf32> to vector<1x8x8xf32>
    %37 = arith.subf %33, %36 : vector<1x8x8xf32>
    %38 = math.exp %37 : vector<1x8x8xf32>
    %cst_25 = arith.constant dense<0.000000e+00> : vector<1x8xf32>
    %39 = vector.multi_reduction <add>, %38, %cst_25 [2] : vector<1x8x8xf32> to vector<1x8xf32>
    %40 = vector.shape_cast %39 : vector<1x8xf32> to vector<1x8x1xf32>
    %41 = tpu.reciprocal %40 {approx = true} : vector<1x8x1xf32> -> vector<1x8x1xf32>
    %42 = vector.broadcast %41 : vector<1x8x1xf32> to vector<1x8x8xf32>
    %43 = arith.mulf %38, %42 : vector<1x8x8xf32>
    %44 = vector.broadcast %26 : vector<1x1x8xf32> to vector<1x8x8xf32>
    %45 = arith.addf %21, %44 : vector<1x8x8xf32>
    %cst_26 = arith.constant dense<0xFF800000> : vector<1x8xf32>
    %46 = vector.multi_reduction <maximumf>, %45, %cst_26 [2] : vector<1x8x8xf32> to vector<1x8xf32>
    %47 = vector.shape_cast %46 : vector<1x8xf32> to vector<1x8x1xf32>
    %48 = vector.broadcast %47 : vector<1x8x1xf32> to vector<1x8x8xf32>
    %49 = arith.subf %45, %48 : vector<1x8x8xf32>
    %50 = math.exp %49 : vector<1x8x8xf32>
    %cst_27 = arith.constant dense<0.000000e+00> : vector<1x8xf32>
    %51 = vector.multi_reduction <add>, %50, %cst_27 [2] : vector<1x8x8xf32> to vector<1x8xf32>
    %52 = vector.shape_cast %51 : vector<1x8xf32> to vector<1x8x1xf32>
    %53 = tpu.reciprocal %52 {approx = true} : vector<1x8x1xf32> -> vector<1x8x1xf32>
    %54 = vector.broadcast %53 : vector<1x8x1xf32> to vector<1x8x8xf32>
    %55 = arith.mulf %50, %54 : vector<1x8x8xf32>
    %56 = arith.truncf %0 : vector<1x8x128xf32> to vector<1x8x128xbf16>
    %57 = arith.truncf %1 : vector<1x8x128xf32> to vector<1x8x128xbf16>
    %58 = arith.truncf %43 : vector<1x8x8xf32> to vector<1x8x8xbf16>
    "tpu.trace_start"() <{level = 10 : i32, message = "bqk,bkd->bqd"}> : () -> ()
    %cst_28 = arith.constant dense<0.000000e+00> : vector<1x8x128xf32>
    %59 = tpu.matmul %58, %57, %cst_28 {dimension_numbers = #tpu.dot_dimension_numbers<[2], [1], [1], [2], [0, 0, 0, 1, 1, 2], [0], [0]>} : vector<1x8x8xbf16>, vector<1x8x128xbf16>, vector<1x8x128xf32> -> vector<1x8x128xf32>
    "tpu.trace_stop"() : () -> ()
    %60 = arith.truncf %55 : vector<1x8x8xf32> to vector<1x8x8xbf16>
    "tpu.trace_start"() <{level = 10 : i32, message = "bkq,bqd->bkd"}> : () -> ()
    %cst_29 = arith.constant dense<0.000000e+00> : vector<1x8x128xf32>
    %61 = tpu.matmul %60, %56, %cst_29 {dimension_numbers = #tpu.dot_dimension_numbers<[2], [1], [1], [2], [0, 0, 0, 1, 1, 2], [0], [0]>} : vector<1x8x8xbf16>, vector<1x8x128xbf16>, vector<1x8x128xf32> -> vector<1x8x128xf32>
    "tpu.trace_stop"() : () -> ()
    %c0_30 = arith.constant 0 : index
    %c0_31 = arith.constant 0 : index
    %62 = vector.load %arg7[%c0_30, %c0_31] : memref<128x128xf32, #tpu.memory_space<vmem>>, vector<128x128xf32>
    %c0_32 = arith.constant 0 : index
    %c0_33 = arith.constant 0 : index
    %63 = vector.load %arg8[%c0_32, %c0_33] : memref<128x128xf32, #tpu.memory_space<vmem>>, vector<128x128xf32>
    %c0_34 = arith.constant 0 : index
    %c0_35 = arith.constant 0 : index
    %64 = vector.load %arg9[%c0_34, %c0_35] : memref<1x128xf32, #tpu.memory_space<vmem>>, vector<1x128xf32>
    %65 = vector.shape_cast %59 : vector<1x8x128xf32> to vector<8x128xf32>
    %cst_36 = arith.constant dense<0.000000e+00> : vector<8x128xf32>
    %66 = tpu.matmul %65, %62, %cst_36 {dimension_numbers = #tpu.dot_dimension_numbers<[1], [0], [0], [1], [0, 0, 1, 1], [], []>} : vector<8x128xf32>, vector<128x128xf32>, vector<8x128xf32> -> vector<8x128xf32>
    %cst_37 = arith.constant dense<0.000000e+00> : vector<8x128xf32>
    %67 = tpu.matmul %4, %63, %cst_37 {dimension_numbers = #tpu.dot_dimension_numbers<[1], [0], [0], [1], [0, 0, 1, 1], [], []>} : vector<8x128xf32>, vector<128x128xf32>, vector<8x128xf32> -> vector<8x128xf32>
    %68 = arith.addf %66, %67 : vector<8x128xf32>
    %69 = vector.broadcast %64 : vector<1x128xf32> to vector<8x128xf32>
    %70 = arith.addf %68, %69 : vector<8x128xf32>
    %cst_38 = arith.constant 0.000000e+00 : f32
    %71 = vector.broadcast %cst_38 : f32 to vector<8x128xf32>
    %72 = arith.maximumf %70, %71 : vector<8x128xf32>
    %73 = vector.shape_cast %72 : vector<8x128xf32> to vector<1x8x128xf32>
    %74 = vector.shape_cast %61 : vector<1x8x128xf32> to vector<8x128xf32>
    %cst_39 = arith.constant dense<0.000000e+00> : vector<8x128xf32>
    %75 = tpu.matmul %74, %62, %cst_39 {dimension_numbers = #tpu.dot_dimension_numbers<[1], [0], [0], [1], [0, 0, 1, 1], [], []>} : vector<8x128xf32>, vector<128x128xf32>, vector<8x128xf32> -> vector<8x128xf32>
    %cst_40 = arith.constant dense<0.000000e+00> : vector<8x128xf32>
    %76 = tpu.matmul %5, %63, %cst_40 {dimension_numbers = #tpu.dot_dimension_numbers<[1], [0], [0], [1], [0, 0, 1, 1], [], []>} : vector<8x128xf32>, vector<128x128xf32>, vector<8x128xf32> -> vector<8x128xf32>
    %77 = arith.addf %75, %76 : vector<8x128xf32>
    %78 = vector.broadcast %64 : vector<1x128xf32> to vector<8x128xf32>
    %79 = arith.addf %77, %78 : vector<8x128xf32>
    %cst_41 = arith.constant 0.000000e+00 : f32
    %80 = vector.broadcast %cst_41 : f32 to vector<8x128xf32>
    %81 = arith.maximumf %79, %80 : vector<8x128xf32>
    %82 = vector.shape_cast %81 : vector<8x128xf32> to vector<1x8x128xf32>
    %cst_42 = arith.constant 1.000000e+00 : f32
    %83 = vector.broadcast %cst_42 : f32 to vector<1x1x8xf32>
    %cst_43 = arith.constant 1.000000e+00 : f32
    %84 = vector.broadcast %cst_43 : f32 to vector<1x1x8xf32>
    "tpu.trace_start"() <{level = 10 : i32, message = "bql,bld->bqd"}> : () -> ()
    %cst_44 = arith.constant dense<0.000000e+00> : vector<1x1x128xf32>
    %85 = tpu.matmul %83, %73, %cst_44 {dimension_numbers = #tpu.dot_dimension_numbers<[2], [1], [1], [2], [0, 0, 0, 1, 1, 2], [0], [0]>} : vector<1x1x8xf32>, vector<1x8x128xf32>, vector<1x1x128xf32> -> vector<1x1x128xf32>
    "tpu.trace_stop"() : () -> ()
    %86 = vector.shape_cast %85 : vector<1x1x128xf32> to vector<1x128xf32>
    "tpu.trace_start"() <{level = 10 : i32, message = "bql,bld->bqd"}> : () -> ()
    %cst_45 = arith.constant dense<0.000000e+00> : vector<1x1x128xf32>
    %87 = tpu.matmul %84, %82, %cst_45 {dimension_numbers = #tpu.dot_dimension_numbers<[2], [1], [1], [2], [0, 0, 0, 1, 1, 2], [0], [0]>} : vector<1x1x8xf32>, vector<1x8x128xf32>, vector<1x1x128xf32> -> vector<1x1x128xf32>
    "tpu.trace_stop"() : () -> ()
    %88 = vector.shape_cast %87 : vector<1x1x128xf32> to vector<1x128xf32>
    %89 = arith.mulf %86, %88 : vector<1x128xf32>
    %90 = arith.subf %86, %88 : vector<1x128xf32>
    %91 = tpu.concatenate %86, %88, %89, %90 in 1 : vector<1x128xf32>, vector<1x128xf32>, vector<1x128xf32>, vector<1x128xf32> -> vector<1x512xf32>
    %c0_46 = arith.constant 0 : index
    %c0_47 = arith.constant 0 : index
    %92 = vector.load %arg10[%c0_46, %c0_47] : memref<512x128xf32, #tpu.memory_space<vmem>>, vector<512x128xf32>
    %cst_48 = arith.constant dense<0.000000e+00> : vector<1x128xf32>
    %93 = tpu.matmul %91, %92, %cst_48 {dimension_numbers = #tpu.dot_dimension_numbers<[1], [0], [0], [1], [0, 0, 1, 1], [], []>} : vector<1x512xf32>, vector<512x128xf32>, vector<1x128xf32> -> vector<1x128xf32>
    %c0_49 = arith.constant 0 : index
    %c0_50 = arith.constant 0 : index
    %94 = vector.load %arg11[%c0_49, %c0_50] : memref<1x128xf32, #tpu.memory_space<vmem>>, vector<1x128xf32>
    %95 = arith.addf %93, %94 : vector<1x128xf32>
    %cst_51 = arith.constant 0.000000e+00 : f32
    %96 = vector.broadcast %cst_51 : f32 to vector<1x128xf32>
    %97 = arith.maximumf %95, %96 : vector<1x128xf32>
    %c0_52 = arith.constant 0 : index
    %c0_53 = arith.constant 0 : index
    %98 = vector.load %arg12[%c0_52, %c0_53] : memref<128x128xf32, #tpu.memory_space<vmem>>, vector<128x128xf32>
    %cst_54 = arith.constant dense<0.000000e+00> : vector<1x128xf32>
    %99 = tpu.matmul %97, %98, %cst_54 {dimension_numbers = #tpu.dot_dimension_numbers<[1], [0], [0], [1], [0, 0, 1, 1], [], []>} : vector<1x128xf32>, vector<128x128xf32>, vector<1x128xf32> -> vector<1x128xf32>
    %c0_55 = arith.constant 0 : index
    %c0_56 = arith.constant 0 : index
    %100 = vector.load %arg13[%c0_55, %c0_56] : memref<1x128xf32, #tpu.memory_space<vmem>>, vector<1x128xf32>
    %101 = arith.addf %99, %100 : vector<1x128xf32>
    %102 = vector.shape_cast %101 : vector<1x128xf32> to vector<1x1x128xf32>
    %c0_57 = arith.constant 0 : index
    %c0_58 = arith.constant 0 : index
    %c0_59 = arith.constant 0 : index
    %103 = vector.load %arg14[%c0_57, %c0_58, %c0_59] : memref<1x1x128xf32, #tpu.memory_space<vmem>>, vector<1x1x128xf32>
    tpu.vector_store %arg14[%c0_57, %c0_58, %c0_59], %102 {strides = array<i32>} : memref<1x1x128xf32, #tpu.memory_space<vmem>>, vector<1x1x128xf32>,
    return
  }
  func.func @transform_0(%arg0: i32) -> (i32, i32, i32) {
    %c0_i32 = arith.constant 0 : i32
    %c0_i32_0 = arith.constant 0 : i32
    %c0_i32_1 = arith.constant 0 : i32
    return %arg0, %c0_i32, %c0_i32_0 : i32, i32, i32
  }
  func.func @transform_1(%arg0: i32) -> (i32, i32, i32) {
    %c0_i32 = arith.constant 0 : i32
    %c0_i32_0 = arith.constant 0 : i32
    %c0_i32_1 = arith.constant 0 : i32
    return %arg0, %c0_i32, %c0_i32_0 : i32, i32, i32
  }
  func.func @transform_2(%arg0: i32) -> (i32, i32, i32) {
    %c0_i32 = arith.constant 0 : i32
    %c0_i32_0 = arith.constant 0 : i32
    %c0_i32_1 = arith.constant 0 : i32
    return %arg0, %c0_i32, %c0_i32_0 : i32, i32, i32
  }
  func.func @transform_3(%arg0: i32) -> (i32, i32, i32) {
    %c0_i32 = arith.constant 0 : i32
    %c0_i32_0 = arith.constant 0 : i32
    %c0_i32_1 = arith.constant 0 : i32
    return %arg0, %c0_i32, %c0_i32_0 : i32, i32, i32
  }
  func.func @transform_4(%arg0: i32) -> (i32, i32) {
    %c0_i32 = arith.constant 0 : i32
    %c0_i32_0 = arith.constant 0 : i32
    %c0_i32_1 = arith.constant 0 : i32
    return %c0_i32, %c0_i32_0 : i32, i32
  }
  func.func @transform_5(%arg0: i32) -> (i32, i32) {
    %c0_i32 = arith.constant 0 : i32
    %c0_i32_0 = arith.constant 0 : i32
    %c0_i32_1 = arith.constant 0 : i32
    return %c0_i32, %c0_i32_0 : i32, i32
  }
  func.func @transform_6(%arg0: i32) -> (i32, i32) {
    %c0_i32 = arith.constant 0 : i32
    %c0_i32_0 = arith.constant 0 : i32
    %c0_i32_1 = arith.constant 0 : i32
    return %c0_i32, %c0_i32_0 : i32, i32
  }
  func.func @transform_7(%arg0: i32) -> (i32, i32) {
    %c0_i32 = arith.constant 0 : i32
    %c0_i32_0 = arith.constant 0 : i32
    %c0_i32_1 = arith.constant 0 : i32
    return %c0_i32, %c0_i32_0 : i32, i32
  }
  func.func @transform_8(%arg0: i32) -> (i32, i32) {
    %c0_i32 = arith.constant 0 : i32
    %c0_i32_0 = arith.constant 0 : i32
    %c0_i32_1 = arith.constant 0 : i32
    return %c0_i32, %c0_i32_0 : i32, i32
  }
  func.func @transform_9(%arg0: i32) -> (i32, i32) {
    %c0_i32 = arith.constant 0 : i32
    %c0_i32_0 = arith.constant 0 : i32
    %c0_i32_1 = arith.constant 0 : i32
    return %c0_i32, %c0_i32_0 : i32, i32
  }
  func.func @transform_10(%arg0: i32) -> (i32, i32) {
    %c0_i32 = arith.constant 0 : i32
    %c0_i32_0 = arith.constant 0 : i32
    %c0_i32_1 = arith.constant 0 : i32
    return %c0_i32, %c0_i32_0 : i32, i32
  }
  func.func @transform_11(%arg0: i32) -> (i32, i32) {
    %c0_i32 = arith.constant 0 : i32
    %c0_i32_0 = arith.constant 0 : i32
    %c0_i32_1 = arith.constant 0 : i32
    return %c0_i32, %c0_i32_0 : i32, i32
  }
  func.func @transform_12(%arg0: i32) -> (i32, i32) {
    %c0_i32 = arith.constant 0 : i32
    %c0_i32_0 = arith.constant 0 : i32
    %c0_i32_1 = arith.constant 0 : i32
    return %c0_i32, %c0_i32_0 : i32, i32
  }
  func.func @transform_13(%arg0: i32) -> (i32, i32, i32) {
    %c0_i32 = arith.constant 0 : i32
    %c0_i32_0 = arith.constant 0 : i32
    %c0_i32_1 = arith.constant 0 : i32
    return %arg0, %c0_i32, %c0_i32_0 : i32, i32, i32
  }
}

</mosaic_0001>

<llo_original>
// kernel: tpu_custom_call.1
$region0: #{tpu_custom_call.1}
  #allocation0 [shape = 'u32[]', space=smem, size = 0x4, offset = 0x4, fixed_abs, tag = 'smem constant byte address 0x4 - core index']
  #allocation1 [shape = 'u32[144,128]{1,0:T(1,128)}', space=vmem, size = 0x12000, scoped, tag = 'internal scratch']
  %s0 = inlined_call_operand.hbm [shape: f32[2,8,128], index: 0, kind: input, shape index: {}]
  %s1 = inlined_call_operand.hbm [shape: f32[2,8,128], index: 1, kind: input, shape index: {}]
  %s2 = inlined_call_operand.vmem [shape: f32[2,1,8], index: 2, kind: input, shape index: {}]
  %s3 = inlined_call_operand.vmem [shape: f32[2,1,8], index: 3, kind: input, shape index: {}]
  %s4 = inlined_call_operand.hbm [shape: f32[128,128], index: 4, kind: input, shape index: {}]
  %s5 = inlined_call_operand.vmem [shape: f32[1,128], index: 5, kind: input, shape index: {}]
  %s6 = inlined_call_operand.hbm [shape: f32[128,128], index: 6, kind: input, shape index: {}]
  %s7 = inlined_call_operand.hbm [shape: f32[128,128], index: 7, kind: input, shape index: {}]
  %s8 = inlined_call_operand.vmem [shape: f32[1,128], index: 8, kind: input, shape index: {}]
  %s9 = inlined_call_operand.hbm [shape: f32[512,128], index: 9, kind: input, shape index: {}]
  %s10 = inlined_call_operand.vmem [shape: f32[1,128], index: 10, kind: input, shape index: {}]
  %s11 = inlined_call_operand.hbm [shape: f32[128,128], index: 11, kind: input, shape index: {}]
  %s12 = inlined_call_operand.vmem [shape: f32[1,128], index: 12, kind: input, shape index: {}]
  %s13 = inlined_call_operand.hbm [shape: f32[2,1,128], index: 13, kind: output, shape index: {}]
  %s14 = sld [smem:[#allocation0]]
  $region113: #{tpu_custom_call.1} parent=0
    _
  %s16 = ssub.s32 1, %s14
  %s17 = scalar_select 0, %s16, %s14
  $region1: #{tpu_custom_call.1} parent=0
    #allocation2 [shape = 'u8[8192]{0}', space=vmem, size = 0x2000, scoped, tag = 'input window, operand 0']
    #allocation3 [shape = 's32[2]{0}', space=sflag, size = 0x8, scoped, tag = 'scoped memory for tpu_custom_call.1']
    #allocation4 [shape = 's32[2]{0}', space=sflag, size = 0x8, scoped, tag = 'scoped memory for tpu_custom_call.1']
    #allocation5 [shape = 'u8[8192]{0}', space=vmem, size = 0x2000, scoped, tag = 'input window, operand 1']
    #allocation6 [shape = 's32[2]{0}', space=sflag, size = 0x8, scoped, tag = 'scoped memory for tpu_custom_call.1']
    #allocation7 [shape = 'u8[65536]{0}', space=vmem, size = 0x10000, scoped, tag = 'input window, operand 4, single buffered']
    #allocation8 [shape = 'u8[65536]{0}', space=vmem, size = 0x10000, scoped, tag = 'input window, operand 6, single buffered']
    #allocation9 [shape = 's32[1]{0}', space=sflag, size = 0x4, scoped, tag = 'scoped memory for tpu_custom_call.1']
    #allocation10 [shape = 'u8[65536]{0}', space=vmem, size = 0x10000, scoped, tag = 'input window, operand 7, single buffered']
    #allocation11 [shape = 'u8[262144]{0}', space=vmem, size = 0x40000, scoped, tag = 'input window, operand 9, single buffered']
    #allocation12 [shape = 's32[1]{0}', space=sflag, size = 0x4, scoped, tag = 'scoped memory for tpu_custom_call.1']
    #allocation13 [shape = 'u8[65536]{0}', space=vmem, size = 0x10000, scoped, tag = 'input window, operand 11, single buffered']
    #allocation14 [shape = 'u8[1024]{0}', space=vmem, size = 0x400, scoped, tag = 'output window, operand 0']
    %18 = vsyncpa [#allocation3], 0
    %s19 = scalar_lea.sflag [#allocation3], 1
    %20 = vsyncpa %s19, 0
    %21 = vsyncpa [#allocation6], 0
    %s22 = scalar_lea.sflag [#allocation6], 1
    %23 = vsyncpa %s22, 0
    %24 = vsyncpa [#allocation9], 0
    %25 = vsyncpa [#allocation12], 0
    %26 = vsyncpa [#allocation4], 0
    %s27 = scalar_lea.sflag [#allocation4], 1
    %28 = vsyncpa %s27, 0
    loop: start=0, step=1, limit=4
    $region2: #{tpu_custom_call.1} parent=1 // loop_pre_header
      _
    $region3: #{tpu_custom_call.1} parent=1 // loop_header
      %s30 = sphi 0, %s34
      %p31 = scmp.ge.s32.totalorder %s30, 4
      %s40 = sphi 0, %s42
      %s43 = sphi 0, %s40
      %s44 = sphi 0, %s43
      %s60 = sphi 0, %s44
      %s66 = sphi 0, %s68
      %s69 = sphi 0, %s66
      %s70 = sphi 0, %s69
      %s86 = sphi 0, %s70
      %s92 = sphi 0, %s94
      %s95 = sphi 0, %s92
      %s96 = sphi 0, %s95
      %s112 = sphi 0, %s96
      %s118 = sphi 0, %s120
      %s121 = sphi 0, %s118
      %s122 = sphi 0, %s121
      %s138 = sphi 0, %s122
      %s142 = sphi 0, %s142
      %s144 = sphi 0, %s142
      %s145 = sphi 0, %s144
      %s159 = sphi 0, %s145
      %s163 = sphi 0, %s163
      %s165 = sphi 0, %s163
      %s166 = sphi 0, %s165
      %s180 = sphi 0, %s166
      %s184 = sphi 0, %s184
      %s186 = sphi 0, %s184
      %s187 = sphi 0, %s186
      %s201 = sphi 0, %s187
      %s205 = sphi 0, %s205
      %s207 = sphi 0, %s205
      %s208 = sphi 0, %s207
      %s222 = sphi 0, %s208
      %s226 = sphi 0, %s226
      %s228 = sphi 0, %s226
      %s229 = sphi 0, %s228
      %s243 = sphi 0, %s229
      %s247 = sphi 0, %s247
      %s249 = sphi 0, %s247
      %s250 = sphi 0, %s249
      %s264 = sphi 0, %s250
      %s268 = sphi 0, %s268
      %s270 = sphi 0, %s268
      %s271 = sphi 0, %s270
      %s285 = sphi 0, %s271
      %s289 = sphi 0, %s289
      %s291 = sphi 0, %s289
      %s292 = sphi 0, %s291
      %s306 = sphi 0, %s292
      %s310 = sphi 0, %s310
      %s312 = sphi 0, %s310
      %s313 = sphi 0, %s312
      %s327 = sphi 0, %s313
      %s333 = sphi 0, %s335
      %s336 = sphi 0, %s333
      %s337 = sphi 0, %s336
      %s353 = sphi 0, %s337
    $region4: #{tpu_custom_call.1} parent=1 // loop_header_branch
      %33 = sbr.rel (%p31) target = $region8
    $region5: #{tpu_custom_call.1} parent=1 // loop_body
      %s35 = ssub.s32 %s30, 1
      %s36 = ssub.s32 %s30, 2
      %s37 = sadd.s32 %s30, 1
      %s38 = ssub.s32 %s30, %s37
      %p39 = scmp.eq.s32.totalorder %s38, 0
      %s41 = sadd.s32 %s40, 1
      %s42 = scalar_select %p39, %s40, %s41
      %p45 = pneg %p39
      %p46 = scmp.eq.s32.totalorder %s30, 1
      %p47 = por %p45, %p46
      %p48 = scmp.ne.s32.totalorder %s40, %s43
      %p49 = scmp.eq.s32.totalorder %s30, 0
      %p50 = por %p48, %p49
      %p51 = scmp.ne.s32.totalorder %s40, %s43
      %p52 = scmp.eq.s32.totalorder %s35, 1
      %p53 = por %p51, %p52
      %p54 = scmp.ne.s32.totalorder %s43, %s44
      %p55 = scmp.eq.s32.totalorder %s35, 0
      %p56 = por %p54, %p55
      %p57 = scmp.ne.s32.totalorder %s43, %s44
      %p58 = scmp.eq.s32.totalorder %s36, 1
      %p59 = por %p57, %p58
      %p61 = scmp.ne.s32.totalorder %s44, %s60
      %p62 = scmp.eq.s32.totalorder %s36, 0
      %p63 = por %p61, %p62
      %s64 = ssub.s32 %s30, %s37
      %p65 = scmp.eq.s32.totalorder %s64, 0
      %s67 = sadd.s32 %s66, 1
      %s68 = scalar_select %p65, %s66, %s67
      %p71 = pneg %p65
      %p72 = scmp.eq.s32.totalorder %s30, 1
      %p73 = por %p71, %p72
      %p74 = scmp.ne.s32.totalorder %s66, %s69
      %p75 = scmp.eq.s32.totalorder %s30, 0
      %p76 = por %p74, %p75
      %p77 = scmp.ne.s32.totalorder %s66, %s69
      %p78 = scmp.eq.s32.totalorder %s35, 1
      %p79 = por %p77, %p78
      %p80 = scmp.ne.s32.totalorder %s69, %s70
      %p81 = scmp.eq.s32.totalorder %s35, 0
      %p82 = por %p80, %p81
      %p83 = scmp.ne.s32.totalorder %s69, %s70
      %p84 = scmp.eq.s32.totalorder %s36, 1
      %p85 = por %p83, %p84
      %p87 = scmp.ne.s32.totalorder %s70, %s86
      %p88 = scmp.eq.s32.totalorder %s36, 0
      %p89 = por %p87, %p88
      %s90 = ssub.s32 %s30, %s37
      %p91 = scmp.eq.s32.totalorder %s90, 0
      %s93 = sadd.s32 %s92, 1
      %s94 = scalar_select %p91, %s92, %s93
      %p97 = pneg %p91
      %p98 = scmp.eq.s32.totalorder %s30, 1
      %p99 = por %p97, %p98
      %p100 = scmp.ne.s32.totalorder %s92, %s95
      %p101 = scmp.eq.s32.totalorder %s30, 0
      %p102 = por %p100, %p101
      %p103 = scmp.ne.s32.totalorder %s92, %s95
      %p104 = scmp.eq.s32.totalorder %s35, 1
      %p105 = por %p103, %p104
      %p106 = scmp.ne.s32.totalorder %s95, %s96
      %p107 = scmp.eq.s32.totalorder %s35, 0
      %p108 = por %p106, %p107
      %p109 = scmp.ne.s32.totalorder %s95, %s96
      %p110 = scmp.eq.s32.totalorder %s36, 1
      %p111 = por %p109, %p110
      %p113 = scmp.ne.s32.totalorder %s96, %s112
      %p114 = scmp.eq.s32.totalorder %s36, 0
      %p115 = por %p113, %p114
      %s116 = ssub.s32 %s30, %s37
      %p117 = scmp.eq.s32.totalorder %s116, 0
      %s119 = sadd.s32 %s118, 1
      %s120 = scalar_select %p117, %s118, %s119
      %p123 = pneg %p117
      %p124 = scmp.eq.s32.totalorder %s30, 1
      %p125 = por %p123, %p124
      %p126 = scmp.ne.s32.totalorder %s118, %s121
      %p127 = scmp.eq.s32.totalorder %s30, 0
      %p128 = por %p126, %p127
      %p129 = scmp.ne.s32.totalorder %s118, %s121
      %p130 = scmp.eq.s32.totalorder %s35, 1
      %p131 = por %p129, %p130
      %p132 = scmp.ne.s32.totalorder %s121, %s122
      %p133 = scmp.eq.s32.totalorder %s35, 0
      %p134 = por %p132, %p133
      %p135 = scmp.ne.s32.totalorder %s121, %s122
      %p136 = scmp.eq.s32.totalorder %s36, 1
      %p137 = por %p135, %p136
      %p139 = scmp.ne.s32.totalorder %s122, %s138
      %p140 = scmp.eq.s32.totalorder %s36, 0
      %p141 = por %p139, %p140
      %s143 = sadd.s32 %s142, 1
      %p146 = scmp.eq.s32.totalorder %s30, 1
      %p147 = scmp.ne.s32.totalorder %s142, %s144
      %p148 = scmp.eq.s32.totalorder %s30, 0
      %p149 = por %p147, %p148
      %p150 = scmp.ne.s32.totalorder %s142, %s144
      %p151 = scmp.eq.s32.totalorder %s35, 1
      %p152 = por %p150, %p151
      %p153 = scmp.ne.s32.totalorder %s144, %s145
      %p154 = scmp.eq.s32.totalorder %s35, 0
      %p155 = por %p153, %p154
      %p156 = scmp.ne.s32.totalorder %s144, %s145
      %p157 = scmp.eq.s32.totalorder %s36, 1
      %p158 = por %p156, %p157
      %p160 = scmp.ne.s32.totalorder %s145, %s159
      %p161 = scmp.eq.s32.totalorder %s36, 0
      %p162 = por %p160, %p161
      %s164 = sadd.s32 %s163, 1
      %p167 = scmp.eq.s32.totalorder %s30, 1
      %p168 = scmp.ne.s32.totalorder %s163, %s165
      %p169 = scmp.eq.s32.totalorder %s30, 0
      %p170 = por %p168, %p169
      %p171 = scmp.ne.s32.totalorder %s163, %s165
      %p172 = scmp.eq.s32.totalorder %s35, 1
      %p173 = por %p171, %p172
      %p174 = scmp.ne.s32.totalorder %s165, %s166
      %p175 = scmp.eq.s32.totalorder %s35, 0
      %p176 = por %p174, %p175
      %p177 = scmp.ne.s32.totalorder %s165, %s166
      %p178 = scmp.eq.s32.totalorder %s36, 1
      %p179 = por %p177, %p178
      %p181 = scmp.ne.s32.totalorder %s166, %s180
      %p182 = scmp.eq.s32.totalorder %s36, 0
      %p183 = por %p181, %p182
      %s185 = sadd.s32 %s184, 1
      %p188 = scmp.eq.s32.totalorder %s30, 1
      %p189 = scmp.ne.s32.totalorder %s184, %s186
      %p190 = scmp.eq.s32.totalorder %s30, 0
      %p191 = por %p189, %p190
      %p192 = scmp.ne.s32.totalorder %s184, %s186
      %p193 = scmp.eq.s32.totalorder %s35, 1
      %p194 = por %p192, %p193
      %p195 = scmp.ne.s32.totalorder %s186, %s187
      %p196 = scmp.eq.s32.totalorder %s35, 0
      %p197 = por %p195, %p196
      %p198 = scmp.ne.s32.totalorder %s186, %s187
      %p199 = scmp.eq.s32.totalorder %s36, 1
      %p200 = por %p198, %p199
      %p202 = scmp.ne.s32.totalorder %s187, %s201
      %p203 = scmp.eq.s32.totalorder %s36, 0
      %p204 = por %p202, %p203
      %s206 = sadd.s32 %s205, 1
      %p209 = scmp.eq.s32.totalorder %s30, 1
      %p210 = scmp.ne.s32.totalorder %s205, %s207
      %p211 = scmp.eq.s32.totalorder %s30, 0
      %p212 = por %p210, %p211
      %p213 = scmp.ne.s32.totalorder %s205, %s207
      %p214 = scmp.eq.s32.totalorder %s35, 1
      %p215 = por %p213, %p214
      %p216 = scmp.ne.s32.totalorder %s207, %s208
      %p217 = scmp.eq.s32.totalorder %s35, 0
      %p218 = por %p216, %p217
      %p219 = scmp.ne.s32.totalorder %s207, %s208
      %p220 = scmp.eq.s32.totalorder %s36, 1
      %p221 = por %p219, %p220
      %p223 = scmp.ne.s32.totalorder %s208, %s222
      %p224 = scmp.eq.s32.totalorder %s36, 0
      %p225 = por %p223, %p224
      %s227 = sadd.s32 %s226, 1
      %p230 = scmp.eq.s32.totalorder %s30, 1
      %p231 = scmp.ne.s32.totalorder %s226, %s228
      %p232 = scmp.eq.s32.totalorder %s30, 0
      %p233 = por %p231, %p232
      %p234 = scmp.ne.s32.totalorder %s226, %s228
      %p235 = scmp.eq.s32.totalorder %s35, 1
      %p236 = por %p234, %p235
      %p237 = scmp.ne.s32.totalorder %s228, %s229
      %p238 = scmp.eq.s32.totalorder %s35, 0
      %p239 = por %p237, %p238
      %p240 = scmp.ne.s32.totalorder %s228, %s229
      %p241 = scmp.eq.s32.totalorder %s36, 1
      %p242 = por %p240, %p241
      %p244 = scmp.ne.s32.totalorder %s229, %s243
      %p245 = scmp.eq.s32.totalorder %s36, 0
      %p246 = por %p244, %p245
      %s248 = sadd.s32 %s247, 1
      %p251 = scmp.eq.s32.totalorder %s30, 1
      %p252 = scmp.ne.s32.totalorder %s247, %s249
      %p253 = scmp.eq.s32.totalorder %s30, 0
      %p254 = por %p252, %p253
      %p255 = scmp.ne.s32.totalorder %s247, %s249
      %p256 = scmp.eq.s32.totalorder %s35, 1
      %p257 = por %p255, %p256
      %p258 = scmp.ne.s32.totalorder %s249, %s250
      %p259 = scmp.eq.s32.totalorder %s35, 0
      %p260 = por %p258, %p259
      %p261 = scmp.ne.s32.totalorder %s249, %s250
      %p262 = scmp.eq.s32.totalorder %s36, 1
      %p263 = por %p261, %p262
      %p265 = scmp.ne.s32.totalorder %s250, %s264
      %p266 = scmp.eq.s32.totalorder %s36, 0
      %p267 = por %p265, %p266
      %s269 = sadd.s32 %s268, 1
      %p272 = scmp.eq.s32.totalorder %s30, 1
      %p273 = scmp.ne.s32.totalorder %s268, %s270
      %p274 = scmp.eq.s32.totalorder %s30, 0
      %p275 = por %p273, %p274
      %p276 = scmp.ne.s32.totalorder %s268, %s270
      %p277 = scmp.eq.s32.totalorder %s35, 1
      %p278 = por %p276, %p277
      %p279 = scmp.ne.s32.totalorder %s270, %s271
      %p280 = scmp.eq.s32.totalorder %s35, 0
      %p281 = por %p279, %p280
      %p282 = scmp.ne.s32.totalorder %s270, %s271
      %p283 = scmp.eq.s32.totalorder %s36, 1
      %p284 = por %p282, %p283
      %p286 = scmp.ne.s32.totalorder %s271, %s285
      %p287 = scmp.eq.s32.totalorder %s36, 0
      %p288 = por %p286, %p287
      %s290 = sadd.s32 %s289, 1
      %p293 = scmp.eq.s32.totalorder %s30, 1
      %p294 = scmp.ne.s32.totalorder %s289, %s291
      %p295 = scmp.eq.s32.totalorder %s30, 0
      %p296 = por %p294, %p295
      %p297 = scmp.ne.s32.totalorder %s289, %s291
      %p298 = scmp.eq.s32.totalorder %s35, 1
      %p299 = por %p297, %p298
      %p300 = scmp.ne.s32.totalorder %s291, %s292
      %p301 = scmp.eq.s32.totalorder %s35, 0
      %p302 = por %p300, %p301
      %p303 = scmp.ne.s32.totalorder %s291, %s292
      %p304 = scmp.eq.s32.totalorder %s36, 1
      %p305 = por %p303, %p304
      %p307 = scmp.ne.s32.totalorder %s292, %s306
      %p308 = scmp.eq.s32.totalorder %s36, 0
      %p309 = por %p307, %p308
      %s311 = sadd.s32 %s310, 1
      %p314 = scmp.eq.s32.totalorder %s30, 1
      %p315 = scmp.ne.s32.totalorder %s310, %s312
      %p316 = scmp.eq.s32.totalorder %s30, 0
      %p317 = por %p315, %p316
      %p318 = scmp.ne.s32.totalorder %s310, %s312
      %p319 = scmp.eq.s32.totalorder %s35, 1
      %p320 = por %p318, %p319
      %p321 = scmp.ne.s32.totalorder %s312, %s313
      %p322 = scmp.eq.s32.totalorder %s35, 0
      %p323 = por %p321, %p322
      %p324 = scmp.ne.s32.totalorder %s312, %s313
      %p325 = scmp.eq.s32.totalorder %s36, 1
      %p326 = por %p324, %p325
      %p328 = scmp.ne.s32.totalorder %s313, %s327
      %p329 = scmp.eq.s32.totalorder %s36, 0
      %p330 = por %p328, %p329
      %s331 = ssub.s32 %s30, %s37
      %p332 = scmp.eq.s32.totalorder %s331, 0
      %s334 = sadd.s32 %s333, 1
      %s335 = scalar_select %p332, %s333, %s334
      %p338 = pneg %p332
      %p339 = scmp.eq.s32.totalorder %s30, 1
      %p340 = por %p338, %p339
      %p341 = scmp.ne.s32.totalorder %s333, %s336
      %p342 = scmp.eq.s32.totalorder %s30, 0
      %p343 = por %p341, %p342
      %p344 = scmp.ne.s32.totalorder %s333, %s336
      %p345 = scmp.eq.s32.totalorder %s35, 1
      %p346 = por %p344, %p345
      %p347 = scmp.ne.s32.totalorder %s336, %s337
      %p348 = scmp.eq.s32.totalorder %s35, 0
      %p349 = por %p347, %p348
      %p350 = scmp.ne.s32.totalorder %s336, %s337
      %p351 = scmp.eq.s32.totalorder %s36, 1
      %p352 = por %p350, %p351
      %p354 = scmp.ne.s32.totalorder %s337, %s353
      %p355 = scmp.eq.s32.totalorder %s36, 0
      %p356 = por %p354, %p355
      %p357 = scmp.le.s32.totalorder 1, %s30
      %p358 = scmp.lt.s32.totalorder %s30, 3
      %p359 = pnand %p357, %p358
      %p360 = pneg %p359
      // Predicated region
      $region9: #{tpu_custom_call.1} parent=5 // pred_check
        _
      $region10: #{tpu_custom_call.1} parent=5 // pred_check_branch
        %362 = sbr.rel (%p359) target = $region12
      $region11: #{tpu_custom_call.1} parent=5 // pred_region
        %s363 = ssub.s32 %s30, 1
        // Predicated region
        $region13: #{tpu_custom_call.1} parent=11 // pred_check
          %p364 = pneg %p155
        $region14: #{tpu_custom_call.1} parent=11 // pred_check_branch
          %366 = sbr.rel (%p364) target = $region16
        $region15: #{tpu_custom_call.1} parent=11 // pred_region
          %s368 = ssub.s32 2048, 2048
          %369 = vsyncadd [#allocation6], %s368
          %s370 = sshll.u32 [#allocation7], 4
          %s371 = int_to_ptr.vmem [resolvable:$true] %s370
          %376 = dma.hbm_to_vmem [thread:$0]  %s4, 2048, %s371, [#allocation6], 128, 128, 8
        $region16: #{tpu_custom_call.1} parent=11 // pred_fallthru
          _
        // Predicated region
        $region17: #{tpu_custom_call.1} parent=11 // pred_check
          %p377 = pneg %p176
        $region18: #{tpu_custom_call.1} parent=11 // pred_check_branch
          %379 = sbr.rel (%p377) target = $region20
        $region19: #{tpu_custom_call.1} parent=11 // pred_region
          _
        $region20: #{tpu_custom_call.1} parent=11 // pred_fallthru
          _
        // Predicated region
        $region21: #{tpu_custom_call.1} parent=11 // pred_check
          %p380 = pneg %p197
        $region22: #{tpu_custom_call.1} parent=11 // pred_check_branch
          %382 = sbr.rel (%p380) target = $region24
        $region23: #{tpu_custom_call.1} parent=11 // pred_region
          %s384 = ssub.s32 2048, 2048
          %385 = vsyncadd [#allocation9], %s384
          %s386 = sshll.u32 [#allocation8], 4
          %s387 = int_to_ptr.vmem [resolvable:$true] %s386
          %392 = dma.hbm_to_vmem [thread:$0]  %s6, 2048, %s387, [#allocation9], 128, 128, 8
        $region24: #{tpu_custom_call.1} parent=11 // pred_fallthru
          _
        // Predicated region
        $region25: #{tpu_custom_call.1} parent=11 // pred_check
          %p393 = pneg %p218
        $region26: #{tpu_custom_call.1} parent=11 // pred_check_branch
          %395 = sbr.rel (%p393) target = $region28
        $region27: #{tpu_custom_call.1} parent=11 // pred_region
          %s397 = ssub.s32 2048, 2048
          %398 = vsyncadd [#allocation9], %s397
          %s399 = sshll.u32 [#allocation10], 4
          %s400 = int_to_ptr.vmem [resolvable:$true] %s399
          %405 = dma.hbm_to_vmem [thread:$0]  %s7, 2048, %s400, [#allocation9], 128, 128, 8
        $region28: #{tpu_custom_call.1} parent=11 // pred_fallthru
          _
        // Predicated region
        $region29: #{tpu_custom_call.1} parent=11 // pred_check
          %p406 = pneg %p239
        $region30: #{tpu_custom_call.1} parent=11 // pred_check_branch
          %408 = sbr.rel (%p406) target = $region32
        $region31: #{tpu_custom_call.1} parent=11 // pred_region
          _
        $region32: #{tpu_custom_call.1} parent=11 // pred_fallthru
          _
        // Predicated region
        $region33: #{tpu_custom_call.1} parent=11 // pred_check
          %p409 = pneg %p260
        $region34: #{tpu_custom_call.1} parent=11 // pred_check_branch
          %411 = sbr.rel (%p409) target = $region36
        $region35: #{tpu_custom_call.1} parent=11 // pred_region
          %s413 = ssub.s32 8192, 8192
          %414 = vsyncadd [#allocation12], %s413
          %s415 = sshll.u32 [#allocation11], 4
          %s416 = int_to_ptr.vmem [resolvable:$true] %s415
          %421 = dma.hbm_to_vmem [thread:$0]  %s9, 8192, %s416, [#allocation12], 128, 128, 8
        $region36: #{tpu_custom_call.1} parent=11 // pred_fallthru
          _
        // Predicated region
        $region37: #{tpu_custom_call.1} parent=11 // pred_check
          %p422 = pneg %p281
        $region38: #{tpu_custom_call.1} parent=11 // pred_check_branch
          %424 = sbr.rel (%p422) target = $region40
        $region39: #{tpu_custom_call.1} parent=11 // pred_region
          _
        $region40: #{tpu_custom_call.1} parent=11 // pred_fallthru
          _
        // Predicated region
        $region41: #{tpu_custom_call.1} parent=11 // pred_check
          %p425 = pneg %p302
        $region42: #{tpu_custom_call.1} parent=11 // pred_check_branch
          %427 = sbr.rel (%p425) target = $region44
        $region43: #{tpu_custom_call.1} parent=11 // pred_region
          %s429 = ssub.s32 2048, 2048
          %430 = vsyncadd [#allocation12], %s429
          %s431 = sshll.u32 [#allocation13], 4
          %s432 = int_to_ptr.vmem [resolvable:$true] %s431
          %437 = dma.hbm_to_vmem [thread:$0]  %s11, 2048, %s432, [#allocation12], 128, 128, 8
        $region44: #{tpu_custom_call.1} parent=11 // pred_fallthru
          _
        // Predicated region
        $region45: #{tpu_custom_call.1} parent=11 // pred_check
          %p438 = pneg %p323
        $region46: #{tpu_custom_call.1} parent=11 // pred_check_branch
          %440 = sbr.rel (%p438) target = $region48
        $region47: #{tpu_custom_call.1} parent=11 // pred_region
          _
        $region48: #{tpu_custom_call.1} parent=11 // pred_fallthru
          _
      $region12: #{tpu_custom_call.1} parent=5 // pred_fallthru
        _
      %p441 = scmp.lt.s32.totalorder %s30, 2
      // Predicated region
      $region49: #{tpu_custom_call.1} parent=5 // pred_check
        %p442 = pneg %p441
      $region50: #{tpu_custom_call.1} parent=5 // pred_check_branch
        %444 = sbr.rel (%p442) target = $region52
      $region51: #{tpu_custom_call.1} parent=5 // pred_region
        // Predicated region
        $region53: #{tpu_custom_call.1} parent=51 // pred_check
          %p445 = pneg %p50
        $region54: #{tpu_custom_call.1} parent=51 // pred_check_branch
          %447 = sbr.rel (%p445) target = $region56
        $region55: #{tpu_custom_call.1} parent=51 // pred_region
          %s448 = sand.u32 %s40, 1
          %s449 = scalar_lea.sflag [#allocation3], %s448
          %s450 = sand.u32 %s40, 1
          %s451 = smul.addr %s450, 8
          %s452 = scalar_lea.vmem [#allocation2], %s451
          %s454 = ssub.s32 128, 128
          %455 = vsyncadd %s449, %s454
          %s456 = smul.addr %s30, 128
          %s457 = scalar_lea.hbm %s0, %s456
          %s459 = sshll.u32 %s452, 4
          %s460 = int_to_ptr.vmem [resolvable:$true] %s459
          %462 = dma.hbm_to_vmem [thread:$0]  %s457, 128, %s460, %s449
        $region56: #{tpu_custom_call.1} parent=51 // pred_fallthru
          _
        // Predicated region
        $region57: #{tpu_custom_call.1} parent=51 // pred_check
          %p463 = pneg %p76
        $region58: #{tpu_custom_call.1} parent=51 // pred_check_branch
          %465 = sbr.rel (%p463) target = $region60
        $region59: #{tpu_custom_call.1} parent=51 // pred_region
          %s466 = sand.u32 %s30, 1
          %s467 = scalar_lea.sflag [#allocation6], %s466
          %s468 = sand.u32 %s66, 1
          %s469 = smul.addr %s468, 8
          %s470 = scalar_lea.vmem [#allocation5], %s469
          %s472 = ssub.s32 128, 128
          %473 = vsyncadd %s467, %s472
          %s474 = smul.addr %s30, 128
          %s475 = scalar_lea.hbm %s1, %s474
          %s477 = sshll.u32 %s470, 4
          %s478 = int_to_ptr.vmem [resolvable:$true] %s477
          %480 = dma.hbm_to_vmem [thread:$0]  %s475, 128, %s478, %s467
        $region60: #{tpu_custom_call.1} parent=51 // pred_fallthru
          _
        // Predicated region
        $region61: #{tpu_custom_call.1} parent=51 // pred_check
          %p481 = pneg %p102
        $region62: #{tpu_custom_call.1} parent=51 // pred_check_branch
          %483 = sbr.rel (%p481) target = $region64
        $region63: #{tpu_custom_call.1} parent=51 // pred_region
          %p484 = scmp.lt.s32.totalorder %s30, 1
          %s485 = scalar_select %p484, %s30, 1
          %s486 = scalar_lea.vmem %s2, %s485
        $region64: #{tpu_custom_call.1} parent=51 // pred_fallthru
          _
        // Predicated region
        $region65: #{tpu_custom_call.1} parent=51 // pred_check
          %p487 = pneg %p128
        $region66: #{tpu_custom_call.1} parent=51 // pred_check_branch
          %489 = sbr.rel (%p487) target = $region68
        $region67: #{tpu_custom_call.1} parent=51 // pred_region
          %p490 = scmp.lt.s32.totalorder %s30, 1
          %s491 = scalar_select %p490, %s30, 1
          %s492 = scalar_lea.vmem %s3, %s491
        $region68: #{tpu_custom_call.1} parent=51 // pred_fallthru
          _
      $region52: #{tpu_custom_call.1} parent=5 // pred_fallthru
        _
      %p493 = scmp.le.s32.totalorder 1, %s30
      %p494 = scmp.lt.s32.totalorder %s30, 3
      %p495 = pnand %p493, %p494
      %p496 = pneg %p495
      // Predicated region
      $region69: #{tpu_custom_call.1} parent=5 // pred_check
        _
      $region70: #{tpu_custom_call.1} parent=5 // pred_check_branch
        %498 = sbr.rel (%p495) target = $region72
      $region71: #{tpu_custom_call.1} parent=5 // pred_region
        %s499 = ssub.s32 %s30, 1
        %s500 = sand.u32 %s43, 1
        %s501 = scalar_lea.sflag [#allocation3], %s500
        %s502 = sand.u32 %s43, 1
        %s503 = smul.addr %s502, 8
        %s504 = scalar_lea.vmem [#allocation2], %s503
        // Predicated region
        $region73: #{tpu_custom_call.1} parent=71 // pred_check
          %p505 = pneg %p56
        $region74: #{tpu_custom_call.1} parent=71 // pred_check_branch
          %507 = sbr.rel (%p505) target = $region76
        $region75: #{tpu_custom_call.1} parent=71 // pred_region
          %508 = dma.done %s501, 128
        $region76: #{tpu_custom_call.1} parent=71 // pred_fallthru
          _
        %s509 = sand.u32 %s35, 1
        %s510 = scalar_lea.sflag [#allocation6], %s509
        %s511 = sand.u32 %s69, 1
        %s512 = smul.addr %s511, 8
        %s513 = scalar_lea.vmem [#allocation5], %s512
        // Predicated region
        $region77: #{tpu_custom_call.1} parent=71 // pred_check
          %p514 = pneg %p82
        $region78: #{tpu_custom_call.1} parent=71 // pred_check_branch
          %516 = sbr.rel (%p514) target = $region80
        $region79: #{tpu_custom_call.1} parent=71 // pred_region
          %517 = dma.done %s510, 128
        $region80: #{tpu_custom_call.1} parent=71 // pred_fallthru
          _
        // Predicated region
        $region81: #{tpu_custom_call.1} parent=71 // pred_check
          %p518 = pneg %p155
        $region82: #{tpu_custom_call.1} parent=71 // pred_check_branch
          %520 = sbr.rel (%p518) target = $region84
        $region83: #{tpu_custom_call.1} parent=71 // pred_region
          %521 = dma.done [#allocation6], 2048
        $region84: #{tpu_custom_call.1} parent=71 // pred_fallthru
          _
        // Predicated region
        $region85: #{tpu_custom_call.1} parent=71 // pred_check
          %p522 = pneg %p197
        $region86: #{tpu_custom_call.1} parent=71 // pred_check_branch
          %524 = sbr.rel (%p522) target = $region88
        $region87: #{tpu_custom_call.1} parent=71 // pred_region
          %525 = dma.done [#allocation9], 2048
        $region88: #{tpu_custom_call.1} parent=71 // pred_fallthru
          _
        // Predicated region
        $region89: #{tpu_custom_call.1} parent=71 // pred_check
          %p526 = pneg %p218
        $region90: #{tpu_custom_call.1} parent=71 // pred_check_branch
          %528 = sbr.rel (%p526) target = $region92
        $region91: #{tpu_custom_call.1} parent=71 // pred_region
          %529 = dma.done [#allocation9], 2048
        $region92: #{tpu_custom_call.1} parent=71 // pred_fallthru
          _
        // Predicated region
        $region93: #{tpu_custom_call.1} parent=71 // pred_check
          %p530 = pneg %p260
        $region94: #{tpu_custom_call.1} parent=71 // pred_check_branch
          %532 = sbr.rel (%p530) target = $region96
        $region95: #{tpu_custom_call.1} parent=71 // pred_region
          %533 = dma.done [#allocation12], 8192
        $region96: #{tpu_custom_call.1} parent=71 // pred_fallthru
          _
        // Predicated region
        $region97: #{tpu_custom_call.1} parent=71 // pred_check
          %p534 = pneg %p302
        $region98: #{tpu_custom_call.1} parent=71 // pred_check_branch
          %536 = sbr.rel (%p534) target = $region100
        $region99: #{tpu_custom_call.1} parent=71 // pred_region
          %537 = dma.done [#allocation12], 2048
        $region100: #{tpu_custom_call.1} parent=71 // pred_fallthru
          _
        %s538 = sand.u32 %s43, 1
        %s539 = scalar_lea.sflag [#allocation3], %s538
        %s540 = sand.u32 %s43, 1
        %s541 = smul.addr %s540, 8
        %s542 = scalar_lea.vmem [#allocation2], %s541
        %p543 = pneg %p56
        %p544 = pneg %p53
        %s545 = sand.u32 %s35, 1
        %s546 = scalar_lea.sflag [#allocation6], %s545
        %s547 = sand.u32 %s69, 1
        %s548 = smul.addr %s547, 8
        %s549 = scalar_lea.vmem [#allocation5], %s548
        %p550 = pneg %p82
        %p551 = pneg %p79
        %p552 = scmp.lt.s32.totalorder %s35, 1
        %s553 = scalar_select %p552, %s35, 1
        %s554 = scalar_lea.vmem %s2, %s553
        %p555 = pneg %p108
        %p556 = pneg %p105
        %p557 = scmp.lt.s32.totalorder %s35, 1
        %s558 = scalar_select %p557, %s35, 1
        %s559 = scalar_lea.vmem %s3, %s558
        %p560 = pneg %p134
        %p561 = pneg %p131
        %p562 = pneg %p155
        %p563 = pneg %p152
        %p564 = pneg %p176
        %p565 = pneg %p173
        %p566 = pneg %p197
        %p567 = pneg %p194
        %p568 = pneg %p218
        %p569 = pneg %p215
        %p570 = pneg %p239
        %p571 = pneg %p236
        %p572 = pneg %p260
        %p573 = pneg %p257
        %p574 = pneg %p281
        %p575 = pneg %p278
        %p576 = pneg %p302
        %p577 = pneg %p299
        %p578 = pneg %p323
        %p579 = pneg %p320
        %p580 = pneg %p349
        %p581 = pneg %p346
        %s582 = sand.u32 %s336, 1
        %s583 = scalar_lea.sflag [#allocation4], %s582
        %s584 = sand.u32 %s336, 1
        %s585 = scalar_lea.vmem [#allocation14], %s584
        %p586 = scmp.lt.s32.totalorder %s35, 1
        %s587 = scalar_select %p586, %s35, 1
        %s588 = scalar_lea.vmem %s2, %s587
        %p589 = scmp.lt.s32.totalorder %s35, 1
        %s590 = scalar_select %p589, %s35, 1
        %s591 = scalar_lea.vmem %s3, %s590
        %v593 = vld [vmem:[%s504] sm:$0xff]
        %v594 = vld [vmem:[%s513] sm:$0xff]
        %v595 = vld [vmem:[#allocation7] sm:$0xff]
        %v596 = vld [vmem:[#allocation7 + $0x8] sm:$0xff]
        %v597 = vld [vmem:[#allocation7 + $0x10] sm:$0xff]
        %v598 = vld [vmem:[#allocation7 + $0x18] sm:$0xff]
        %v599 = vld [vmem:[#allocation7 + $0x20] sm:$0xff]
        %v600 = vld [vmem:[#allocation7 + $0x28] sm:$0xff]
        %v601 = vld [vmem:[#allocation7 + $0x30] sm:$0xff]
        %v602 = vld [vmem:[#allocation7 + $0x38] sm:$0xff]
        %v603 = vld [vmem:[#allocation7 + $0x40] sm:$0xff]
        %v604 = vld [vmem:[#allocation7 + $0x48] sm:$0xff]
        %v605 = vld [vmem:[#allocation7 + $0x50] sm:$0xff]
        %v606 = vld [vmem:[#allocation7 + $0x58] sm:$0xff]
        %v607 = vld [vmem:[#allocation7 + $0x60] sm:$0xff]
        %v608 = vld [vmem:[#allocation7 + $0x68] sm:$0xff]
        %v609 = vld [vmem:[#allocation7 + $0x70] sm:$0xff]
        %v610 = vld [vmem:[#allocation7 + $0x78] sm:$0xff]
        %v611 = vld [vmem:[%s5] sm:$0x1]
        %v613 = vlaneseq
        %v614 = vshrl.u32 %v613, 7
        %v615 = vsub.s32 0, %v614
        %v616 = vrot.slane %v611, %v615
        %618 = vmatprep.subr.mxu0 0.0
        %619 = vmatpush1.msra.mxu0 %v610
        %620 = vmatprep.subr.mxu0 0.0
        %621 = vmatpush1.msra.mxu0 %v609
        %622 = vmatprep.subr.mxu0 0.0
        %623 = vmatpush1.msra.mxu0 %v608
        %624 = vmatprep.subr.mxu0 0.0
        %625 = vmatpush1.msra.mxu0 %v607
        %626 = vmatprep.subr.mxu0 0.0
        %627 = vmatpush1.msra.mxu0 %v606
        %628 = vmatprep.subr.mxu0 0.0
        %629 = vmatpush1.msra.mxu0 %v605
        %630 = vmatprep.subr.mxu0 0.0
        %631 = vmatpush1.msra.mxu0 %v604
        %632 = vmatprep.subr.mxu0 0.0
        %633 = vmatpush1.msra.mxu0 %v603
        %634 = vmatprep.subr.mxu0 0.0
        %635 = vmatpush1.msra.mxu0 %v602
        %636 = vmatprep.subr.mxu0 0.0
        %637 = vmatpush1.msra.mxu0 %v601
        %638 = vmatprep.subr.mxu0 0.0
        %639 = vmatpush1.msra.mxu0 %v600
        %640 = vmatprep.subr.mxu0 0.0
        %641 = vmatpush1.msra.mxu0 %v599
        %642 = vmatprep.subr.mxu0 0.0
        %643 = vmatpush1.msra.mxu0 %v598
        %644 = vmatprep.subr.mxu0 0.0
        %645 = vmatpush1.msra.mxu0 %v597
        %646 = vmatprep.subr.mxu0 0.0
        %647 = vmatpush1.msra.mxu0 %v596
        %648 = vmatprep.subr.mxu0 0.0
        %649 = vmatpush1.msra.mxu0 %v595
        %650 = vmatprep.subr.mxu0 0.0
        %651 = vmatpush2.msra.mxu0 0.0
        %652 = vmatprep.subr.mxu0 0.0
        %653 = vmatpush2.msra.mxu0 0.0
        %654 = vmatprep.subr.mxu0 0.0
        %655 = vmatpush2.msra.mxu0 0.0
        %656 = vmatprep.subr.mxu0 0.0
        %657 = vmatpush2.msra.mxu0 0.0
        %658 = vmatprep.subr.mxu0 0.0
        %659 = vmatpush2.msra.mxu0 0.0
        %660 = vmatprep.subr.mxu0 0.0
        %661 = vmatpush2.msra.mxu0 0.0
        %662 = vmatprep.subr.mxu0 0.0
        %663 = vmatpush2.msra.mxu0 0.0
        %664 = vmatprep.subr.mxu0 0.0
        %665 = vmatpush2.msra.mxu0 0.0
        %666 = vmatprep.subr.mxu0 0.0
        %667 = vmatpush2.msra.mxu0 0.0
        %668 = vmatprep.subr.mxu0 0.0
        %669 = vmatpush2.msra.mxu0 0.0
        %670 = vmatprep.subr.mxu0 0.0
        %671 = vmatpush2.msra.mxu0 0.0
        %672 = vmatprep.subr.mxu0 0.0
        %673 = vmatpush2.msra.mxu0 0.0
        %674 = vmatprep.subr.mxu0 0.0
        %675 = vmatpush2.msra.mxu0 0.0
        %676 = vmatprep.subr.mxu0 0.0
        %677 = vmatpush2.msra.mxu0 0.0
        %678 = vmatprep.subr.mxu0 0.0
        %679 = vmatpush2.msra.mxu0 0.0
        %680 = vmatprep.subr.mxu0 0.0
        %681 = vmatpush2.msra.mxu0 0.0
        %682 = vmatprep.mubr.f32.mxu0 0.0
        %683 = vmatmul.mubr.f32.gmra.mxu0 %v593
        %v684 = vpop.f32.mrf.mxu0
        %v685 = vadd.f32 %v616, %v684
        %v686 = vpop.f32.mrf.mxu0
        %687 = vdwg.mxu0
        %v688 = vmax.f32 %v685, 0.0
        %689 = vmatprep.subr.mxu0 0.0
        %690 = vmatpush1.msra.mxu0 %v610
        %691 = vmatprep.subr.mxu0 0.0
        %692 = vmatpush1.msra.mxu0 %v609
        %693 = vmatprep.subr.mxu0 0.0
        %694 = vmatpush1.msra.mxu0 %v608
        %695 = vmatprep.subr.mxu0 0.0
        %696 = vmatpush1.msra.mxu0 %v607
        %697 = vmatprep.subr.mxu0 0.0
        %698 = vmatpush1.msra.mxu0 %v606
        %699 = vmatprep.subr.mxu0 0.0
        %700 = vmatpush1.msra.mxu0 %v605
        %701 = vmatprep.subr.mxu0 0.0
        %702 = vmatpush1.msra.mxu0 %v604
        %703 = vmatprep.subr.mxu0 0.0
        %704 = vmatpush1.msra.mxu0 %v603
        %705 = vmatprep.subr.mxu0 0.0
        %706 = vmatpush1.msra.mxu0 %v602
        %707 = vmatprep.subr.mxu0 0.0
        %708 = vmatpush1.msra.mxu0 %v601
        %709 = vmatprep.subr.mxu0 0.0
        %710 = vmatpush1.msra.mxu0 %v600
        %711 = vmatprep.subr.mxu0 0.0
        %712 = vmatpush1.msra.mxu0 %v599
        %713 = vmatprep.subr.mxu0 0.0
        %714 = vmatpush1.msra.mxu0 %v598
        %715 = vmatprep.subr.mxu0 0.0
        %716 = vmatpush1.msra.mxu0 %v597
        %717 = vmatprep.subr.mxu0 0.0
        %718 = vmatpush1.msra.mxu0 %v596
        %719 = vmatprep.subr.mxu0 0.0
        %720 = vmatpush1.msra.mxu0 %v595
        %721 = vmatprep.subr.mxu0 0.0
        %722 = vmatpush2.msra.mxu0 0.0
        %723 = vmatprep.subr.mxu0 0.0
        %724 = vmatpush2.msra.mxu0 0.0
        %725 = vmatprep.subr.mxu0 0.0
        %726 = vmatpush2.msra.mxu0 0.0
        %727 = vmatprep.subr.mxu0 0.0
        %728 = vmatpush2.msra.mxu0 0.0
        %729 = vmatprep.subr.mxu0 0.0
        %730 = vmatpush2.msra.mxu0 0.0
        %731 = vmatprep.subr.mxu0 0.0
        %732 = vmatpush2.msra.mxu0 0.0
        %733 = vmatprep.subr.mxu0 0.0
        %734 = vmatpush2.msra.mxu0 0.0
        %735 = vmatprep.subr.mxu0 0.0
        %736 = vmatpush2.msra.mxu0 0.0
        %737 = vmatprep.subr.mxu0 0.0
        %738 = vmatpush2.msra.mxu0 0.0
        %739 = vmatprep.subr.mxu0 0.0
        %740 = vmatpush2.msra.mxu0 0.0
        %741 = vmatprep.subr.mxu0 0.0
        %742 = vmatpush2.msra.mxu0 0.0
        %743 = vmatprep.subr.mxu0 0.0
        %744 = vmatpush2.msra.mxu0 0.0
        %745 = vmatprep.subr.mxu0 0.0
        %746 = vmatpush2.msra.mxu0 0.0
        %747 = vmatprep.subr.mxu0 0.0
        %748 = vmatpush2.msra.mxu0 0.0
        %749 = vmatprep.subr.mxu0 0.0
        %750 = vmatpush2.msra.mxu0 0.0
        %751 = vmatprep.subr.mxu0 0.0
        %752 = vmatpush2.msra.mxu0 0.0
        %753 = vmatprep.mubr.f32.mxu0 0.0
        %754 = vmatmul.mubr.f32.gmra.mxu0 %v594
        %v755 = vpop.f32.mrf.mxu0
        %v756 = vadd.f32 %v616, %v755
        %v757 = vpop.f32.mrf.mxu0
        %758 = vdwg.mxu0
        %v759 = vmax.f32 %v756, 0.0
        %v760 = vpack.c.bf16 %v688, %v688
        %v761 = vpack.c.bf16 %v759, %v759
        %v762 = vld [vmem:[%s588] sm:$0x1]
        %v763 = vsub.f32 %v762, 1.0
        %v764 = vmul.f32 %v763, 1e+09
        %v765 = vld [vmem:[%s591] sm:$0x1]
        %v766 = vsub.f32 %v765, 1.0
        %v767 = vmul.f32 %v766, 1e+09
        %v769 = vlaneseq
        %v770 = vshrl.u32 %v769, 7
        %v771 = vsub.s32 0, %v770
        %v772 = vrot.slane %v767, %v771
        %774 = vmatprep.subr.bf16.mxu0 0
        %775 = vmatpush1.bf16.xpose.msra.mxu0 0
        %776 = vmatprep.subr.bf16.mxu0 0
        %777 = vmatpush1.bf16.xpose.msra.mxu0 0
        %778 = vmatprep.subr.bf16.mxu0 0
        %779 = vmatpush1.bf16.xpose.msra.mxu0 0
        %780 = vmatprep.subr.bf16.mxu0 0
        %781 = vmatpush1.bf16.xpose.msra.mxu0 0
        %782 = vmatprep.subr.bf16.mxu0 0
        %783 = vmatpush1.bf16.xpose.msra.mxu0 0
        %784 = vmatprep.subr.bf16.mxu0 0
        %785 = vmatpush1.bf16.xpose.msra.mxu0 0
        %786 = vmatprep.subr.bf16.mxu0 0
        %787 = vmatpush1.bf16.xpose.msra.mxu0 0
        %788 = vmatprep.subr.bf16.mxu0 0
        %789 = vmatpush1.bf16.xpose.msra.mxu0 %v761
        %790 = vmatprep.subr.bf16.mxu0 0
        %791 = vmatpush2.bf16.xpose.msra.mxu0 0
        %792 = vmatprep.subr.bf16.mxu0 0
        %793 = vmatpush2.bf16.xpose.msra.mxu0 0
        %794 = vmatprep.subr.bf16.mxu0 0
        %795 = vmatpush2.bf16.xpose.msra.mxu0 0
        %796 = vmatprep.subr.bf16.mxu0 0
        %797 = vmatpush2.bf16.xpose.msra.mxu0 0
        %798 = vmatprep.subr.bf16.mxu0 0
        %799 = vmatpush2.bf16.xpose.msra.mxu0 0
        %800 = vmatprep.subr.bf16.mxu0 0
        %801 = vmatpush2.bf16.xpose.msra.mxu0 0
        %802 = vmatprep.subr.bf16.mxu0 0
        %803 = vmatpush2.bf16.xpose.msra.mxu0 0
        %804 = vmatprep.subr.bf16.mxu0 0
        %805 = vmatpush2.bf16.xpose.msra.mxu0 0
        %806 = vmatprep.mubr.bf16.mxu0 0
        %807 = vmatmul.mubr.bf16.gmra.mxu0 %v760
        %v808 = vpop.f32.mrf.mxu0
        %v809 = vadd.f32 %v772, %v808
        %v810 = vpop.f32.mrf.mxu0
        %v811 = vpop.f32.mrf.mxu0
        %v812 = vpop.f32.mrf.mxu0
        %813 = vdwg.mxu0
        %vm814 = vcmask 64512
        %v815 = vsel %vm814, %v809, -inf
        %816 = vmax.xlane.f32.xlu0 %v815
        %v817 = vpop.xlane.xlu0 %816
        %v818 = vsub.f32 %v809, %v817
        %v819 = vmul.f32 %v818, 1.442695
        %v820 = vpow.pop %v819
        %v821 = vsel %vm814, %v820, 0.0
        %822 = vadd.xlane.f32.xlu0 %v821
        %v823 = vpop.xlane.xlu0 %822
        %v824 = vrcp.pop %v823
        %v825 = vmul.f32 %v820, %v824
        %v827 = vlaneseq
        %v828 = vshrl.u32 %v827, 7
        %v829 = vsub.s32 0, %v828
        %v830 = vrot.slane %v764, %v829
        %832 = vmatprep.subr.bf16.mxu0 0
        %833 = vmatpush1.bf16.xpose.msra.mxu0 0
        %834 = vmatprep.subr.bf16.mxu0 0
        %835 = vmatpush1.bf16.xpose.msra.mxu0 0
        %836 = vmatprep.subr.bf16.mxu0 0
        %837 = vmatpush1.bf16.xpose.msra.mxu0 0
        %838 = vmatprep.subr.bf16.mxu0 0
        %839 = vmatpush1.bf16.xpose.msra.mxu0 0
        %840 = vmatprep.subr.bf16.mxu0 0
        %841 = vmatpush1.bf16.xpose.msra.mxu0 0
        %842 = vmatprep.subr.bf16.mxu0 0
        %843 = vmatpush1.bf16.xpose.msra.mxu0 0
        %844 = vmatprep.subr.bf16.mxu0 0
        %845 = vmatpush1.bf16.xpose.msra.mxu0 0
        %846 = vmatprep.subr.bf16.mxu0 0
        %847 = vmatpush1.bf16.xpose.msra.mxu0 %v760
        %848 = vmatprep.subr.bf16.mxu0 0
        %849 = vmatpush2.bf16.xpose.msra.mxu0 0
        %850 = vmatprep.subr.bf16.mxu0 0
        %851 = vmatpush2.bf16.xpose.msra.mxu0 0
        %852 = vmatprep.subr.bf16.mxu0 0
        %853 = vmatpush2.bf16.xpose.msra.mxu0 0
        %854 = vmatprep.subr.bf16.mxu0 0
        %855 = vmatpush2.bf16.xpose.msra.mxu0 0
        %856 = vmatprep.subr.bf16.mxu0 0
        %857 = vmatpush2.bf16.xpose.msra.mxu0 0
        %858 = vmatprep.subr.bf16.mxu0 0
        %859 = vmatpush2.bf16.xpose.msra.mxu0 0
        %860 = vmatprep.subr.bf16.mxu0 0
        %861 = vmatpush2.bf16.xpose.msra.mxu0 0
        %862 = vmatprep.subr.bf16.mxu0 0
        %863 = vmatpush2.bf16.xpose.msra.mxu0 0
        %864 = vmatprep.mubr.bf16.mxu0 0
        %865 = vmatmul.mubr.bf16.gmra.mxu0 %v761
        %v866 = vpop.f32.mrf.mxu0
        %v867 = vadd.f32 %v830, %v866
        %v868 = vpop.f32.mrf.mxu0
        %v869 = vpop.f32.mrf.mxu0
        %v870 = vpop.f32.mrf.mxu0
        %871 = vdwg.mxu0
        %v872 = vsel %vm814, %v867, -inf
        %873 = vmax.xlane.f32.xlu0 %v872
        %v874 = vpop.xlane.xlu0 %873
        %v875 = vsub.f32 %v867, %v874
        %v876 = vmul.f32 %v875, 1.442695
        %v877 = vpow.pop %v876
        %v878 = vsel %vm814, %v877, 0.0
        %879 = vadd.xlane.f32.xlu0 %v878
        %v880 = vpop.xlane.xlu0 %879
        %v881 = vrcp.pop %v880
        %v882 = vmul.f32 %v877, %v881
        %v883 = vpack.c.bf16 %v593, %v593
        %v884 = vpack.c.bf16 %v594, %v594
        %v885 = vpack.c.bf16 %v825, %v825
        %v887 = vsel %vm814, %v885, 0
        %vm889 = vcmask 1043456
        %v891 = vsel %vm889, %v884, 0
        %893 = vmatprep.subr.bf16.mxu0 0
        %894 = vmatpush1.bf16.msra.mxu0 0
        %895 = vmatprep.subr.bf16.mxu0 0
        %896 = vmatpush1.bf16.msra.mxu0 0
        %897 = vmatprep.subr.bf16.mxu0 0
        %898 = vmatpush1.bf16.msra.mxu0 0
        %899 = vmatprep.subr.bf16.mxu0 0
        %900 = vmatpush1.bf16.msra.mxu0 0
        %901 = vmatprep.subr.bf16.mxu0 0
        %902 = vmatpush1.bf16.msra.mxu0 0
        %903 = vmatprep.subr.bf16.mxu0 0
        %904 = vmatpush1.bf16.msra.mxu0 0
        %905 = vmatprep.subr.bf16.mxu0 0
        %906 = vmatpush1.bf16.msra.mxu0 0
        %907 = vmatprep.subr.bf16.mxu0 0
        %908 = vmatpush1.bf16.msra.mxu0 %v891
        %909 = vmatprep.subr.bf16.mxu0 0
        %910 = vmatpush2.bf16.msra.mxu0 0
        %911 = vmatprep.subr.bf16.mxu0 0
        %912 = vmatpush2.bf16.msra.mxu0 0
        %913 = vmatprep.subr.bf16.mxu0 0
        %914 = vmatpush2.bf16.msra.mxu0 0
        %915 = vmatprep.subr.bf16.mxu0 0
        %916 = vmatpush2.bf16.msra.mxu0 0
        %917 = vmatprep.subr.bf16.mxu0 0
        %918 = vmatpush2.bf16.msra.mxu0 0
        %919 = vmatprep.subr.bf16.mxu0 0
        %920 = vmatpush2.bf16.msra.mxu0 0
        %921 = vmatprep.subr.bf16.mxu0 0
        %922 = vmatpush2.bf16.msra.mxu0 0
        %923 = vmatprep.subr.bf16.mxu0 0
        %924 = vmatpush2.bf16.msra.mxu0 0
        %925 = vmatprep.mubr.bf16.mxu0 0
        %926 = vmatmul.mubr.bf16.gmra.mxu0 %v887
        %v927 = vpop.f32.mrf.mxu0
        %v928 = vadd.f32 0.0, %v927
        %v929 = vpop.f32.mrf.mxu0
        %v930 = vpop.f32.mrf.mxu0
        %v931 = vpop.f32.mrf.mxu0
        %932 = vdwg.mxu0
        %v933 = vpack.c.bf16 %v882, %v882
        %v935 = vsel %vm814, %v933, 0
        %v938 = vsel %vm889, %v883, 0
        %940 = vmatprep.subr.bf16.mxu0 0
        %941 = vmatpush1.bf16.msra.mxu0 0
        %942 = vmatprep.subr.bf16.mxu0 0
        %943 = vmatpush1.bf16.msra.mxu0 0
        %944 = vmatprep.subr.bf16.mxu0 0
        %945 = vmatpush1.bf16.msra.mxu0 0
        %946 = vmatprep.subr.bf16.mxu0 0
        %947 = vmatpush1.bf16.msra.mxu0 0
        %948 = vmatprep.subr.bf16.mxu0 0
        %949 = vmatpush1.bf16.msra.mxu0 0
        %950 = vmatprep.subr.bf16.mxu0 0
        %951 = vmatpush1.bf16.msra.mxu0 0
        %952 = vmatprep.subr.bf16.mxu0 0
        %953 = vmatpush1.bf16.msra.mxu0 0
        %954 = vmatprep.subr.bf16.mxu0 0
        %955 = vmatpush1.bf16.msra.mxu0 %v938
        %956 = vmatprep.subr.bf16.mxu0 0
        %957 = vmatpush2.bf16.msra.mxu0 0
        %958 = vmatprep.subr.bf16.mxu0 0
        %959 = vmatpush2.bf16.msra.mxu0 0
        %960 = vmatprep.subr.bf16.mxu0 0
        %961 = vmatpush2.bf16.msra.mxu0 0
        %962 = vmatprep.subr.bf16.mxu0 0
        %963 = vmatpush2.bf16.msra.mxu0 0
        %964 = vmatprep.subr.bf16.mxu0 0
        %965 = vmatpush2.bf16.msra.mxu0 0
        %966 = vmatprep.subr.bf16.mxu0 0
        %967 = vmatpush2.bf16.msra.mxu0 0
        %968 = vmatprep.subr.bf16.mxu0 0
        %969 = vmatpush2.bf16.msra.mxu0 0
        %970 = vmatprep.subr.bf16.mxu0 0
        %971 = vmatpush2.bf16.msra.mxu0 0
        %972 = vmatprep.mubr.bf16.mxu0 0
        %973 = vmatmul.mubr.bf16.gmra.mxu0 %v935
        %v974 = vpop.f32.mrf.mxu0
        %v975 = vadd.f32 0.0, %v974
        %v976 = vpop.f32.mrf.mxu0
        %v977 = vpop.f32.mrf.mxu0
        %v978 = vpop.f32.mrf.mxu0
        %979 = vdwg.mxu0
        %v980 = vld [vmem:[#allocation8] sm:$0xff]
        %v981 = vld [vmem:[#allocation8 + $0x8] sm:$0xff]
        %v982 = vld [vmem:[#allocation8 + $0x10] sm:$0xff]
        %v983 = vld [vmem:[#allocation8 + $0x18] sm:$0xff]
        %v984 = vld [vmem:[#allocation8 + $0x20] sm:$0xff]
        %v985 = vld [vmem:[#allocation8 + $0x28] sm:$0xff]
        %v986 = vld [vmem:[#allocation8 + $0x30] sm:$0xff]
        %v987 = vld [vmem:[#allocation8 + $0x38] sm:$0xff]
        %v988 = vld [vmem:[#allocation8 + $0x40] sm:$0xff]
        %v989 = vld [vmem:[#allocation8 + $0x48] sm:$0xff]
        %v990 = vld [vmem:[#allocation8 + $0x50] sm:$0xff]
        %v991 = vld [vmem:[#allocation8 + $0x58] sm:$0xff]
        %v992 = vld [vmem:[#allocation8 + $0x60] sm:$0xff]
        %v993 = vld [vmem:[#allocation8 + $0x68] sm:$0xff]
        %v994 = vld [vmem:[#allocation8 + $0x70] sm:$0xff]
        %v995 = vld [vmem:[#allocation8 + $0x78] sm:$0xff]
        %v996 = vld [vmem:[#allocation10] sm:$0xff]
        %v997 = vld [vmem:[#allocation10 + $0x8] sm:$0xff]
        %v998 = vld [vmem:[#allocation10 + $0x10] sm:$0xff]
        %v999 = vld [vmem:[#allocation10 + $0x18] sm:$0xff]
        %v1000 = vld [vmem:[#allocation10 + $0x20] sm:$0xff]
        %v1001 = vld [vmem:[#allocation10 + $0x28] sm:$0xff]
        %v1002 = vld [vmem:[#allocation10 + $0x30] sm:$0xff]
        %v1003 = vld [vmem:[#allocation10 + $0x38] sm:$0xff]
        %v1004 = vld [vmem:[#allocation10 + $0x40] sm:$0xff]
        %v1005 = vld [vmem:[#allocation10 + $0x48] sm:$0xff]
        %v1006 = vld [vmem:[#allocation10 + $0x50] sm:$0xff]
        %v1007 = vld [vmem:[#allocation10 + $0x58] sm:$0xff]
        %v1008 = vld [vmem:[#allocation10 + $0x60] sm:$0xff]
        %v1009 = vld [vmem:[#allocation10 + $0x68] sm:$0xff]
        %v1010 = vld [vmem:[#allocation10 + $0x70] sm:$0xff]
        %v1011 = vld [vmem:[#allocation10 + $0x78] sm:$0xff]
        %v1012 = vld [vmem:[%s8] sm:$0x1]
        %1013 = vmatprep.subr.mxu0 0.0
        %1014 = vmatpush1.msra.mxu0 %v1011
        %1015 = vmatprep.subr.mxu0 0.0
        %1016 = vmatpush1.msra.mxu0 %v1010
        %1017 = vmatprep.subr.mxu0 0.0
        %1018 = vmatpush1.msra.mxu0 %v1009
        %1019 = vmatprep.subr.mxu0 0.0
        %1020 = vmatpush1.msra.mxu0 %v1008
        %1021 = vmatprep.subr.mxu0 0.0
        %1022 = vmatpush1.msra.mxu0 %v1007
        %1023 = vmatprep.subr.mxu0 0.0
        %1024 = vmatpush1.msra.mxu0 %v1006
        %1025 = vmatprep.subr.mxu0 0.0
        %1026 = vmatpush1.msra.mxu0 %v1005
        %1027 = vmatprep.subr.mxu0 0.0
        %1028 = vmatpush1.msra.mxu0 %v1004
        %1029 = vmatprep.subr.mxu0 0.0
        %1030 = vmatpush1.msra.mxu0 %v1003
        %1031 = vmatprep.subr.mxu0 0.0
        %1032 = vmatpush1.msra.mxu0 %v1002
        %1033 = vmatprep.subr.mxu0 0.0
        %1034 = vmatpush1.msra.mxu0 %v1001
        %1035 = vmatprep.subr.mxu0 0.0
        %1036 = vmatpush1.msra.mxu0 %v1000
        %1037 = vmatprep.subr.mxu0 0.0
        %1038 = vmatpush1.msra.mxu0 %v999
        %1039 = vmatprep.subr.mxu0 0.0
        %1040 = vmatpush1.msra.mxu0 %v998
        %1041 = vmatprep.subr.mxu0 0.0
        %1042 = vmatpush1.msra.mxu0 %v997
        %1043 = vmatprep.subr.mxu0 0.0
        %1044 = vmatpush1.msra.mxu0 %v996
        %1045 = vmatprep.subr.mxu0 0.0
        %1046 = vmatpush2.msra.mxu0 0.0
        %1047 = vmatprep.subr.mxu0 0.0
        %1048 = vmatpush2.msra.mxu0 0.0
        %1049 = vmatprep.subr.mxu0 0.0
        %1050 = vmatpush2.msra.mxu0 0.0
        %1051 = vmatprep.subr.mxu0 0.0
        %1052 = vmatpush2.msra.mxu0 0.0
        %1053 = vmatprep.subr.mxu0 0.0
        %1054 = vmatpush2.msra.mxu0 0.0
        %1055 = vmatprep.subr.mxu0 0.0
        %1056 = vmatpush2.msra.mxu0 0.0
        %1057 = vmatprep.subr.mxu0 0.0
        %1058 = vmatpush2.msra.mxu0 0.0
        %1059 = vmatprep.subr.mxu0 0.0
        %1060 = vmatpush2.msra.mxu0 0.0
        %1061 = vmatprep.subr.mxu0 0.0
        %1062 = vmatpush2.msra.mxu0 0.0
        %1063 = vmatprep.subr.mxu0 0.0
        %1064 = vmatpush2.msra.mxu0 0.0
        %1065 = vmatprep.subr.mxu0 0.0
        %1066 = vmatpush2.msra.mxu0 0.0
        %1067 = vmatprep.subr.mxu0 0.0
        %1068 = vmatpush2.msra.mxu0 0.0
        %1069 = vmatprep.subr.mxu0 0.0
        %1070 = vmatpush2.msra.mxu0 0.0
        %1071 = vmatprep.subr.mxu0 0.0
        %1072 = vmatpush2.msra.mxu0 0.0
        %1073 = vmatprep.subr.mxu0 0.0
        %1074 = vmatpush2.msra.mxu0 0.0
        %1075 = vmatprep.subr.mxu0 0.0
        %1076 = vmatpush2.msra.mxu0 0.0
        %1077 = vmatprep.mubr.f32.mxu0 0.0
        %1078 = vmatmul.mubr.f32.gmra.mxu0 %v593
        %v1079 = vpop.f32.mrf.mxu0
        %v1080 = vadd.f32 0.0, %v1079
        %v1081 = vpop.f32.mrf.mxu0
        %1082 = vdwg.mxu0
        %1083 = vmatprep.subr.mxu0 0.0
        %1084 = vmatpush1.msra.mxu0 %v995
        %1085 = vmatprep.subr.mxu0 0.0
        %1086 = vmatpush1.msra.mxu0 %v994
        %1087 = vmatprep.subr.mxu0 0.0
        %1088 = vmatpush1.msra.mxu0 %v993
        %1089 = vmatprep.subr.mxu0 0.0
        %1090 = vmatpush1.msra.mxu0 %v992
        %1091 = vmatprep.subr.mxu0 0.0
        %1092 = vmatpush1.msra.mxu0 %v991
        %1093 = vmatprep.subr.mxu0 0.0
        %1094 = vmatpush1.msra.mxu0 %v990
        %1095 = vmatprep.subr.mxu0 0.0
        %1096 = vmatpush1.msra.mxu0 %v989
        %1097 = vmatprep.subr.mxu0 0.0
        %1098 = vmatpush1.msra.mxu0 %v988
        %1099 = vmatprep.subr.mxu0 0.0
        %1100 = vmatpush1.msra.mxu0 %v987
        %1101 = vmatprep.subr.mxu0 0.0
        %1102 = vmatpush1.msra.mxu0 %v986
        %1103 = vmatprep.subr.mxu0 0.0
        %1104 = vmatpush1.msra.mxu0 %v985
        %1105 = vmatprep.subr.mxu0 0.0
        %1106 = vmatpush1.msra.mxu0 %v984
        %1107 = vmatprep.subr.mxu0 0.0
        %1108 = vmatpush1.msra.mxu0 %v983
        %1109 = vmatprep.subr.mxu0 0.0
        %1110 = vmatpush1.msra.mxu0 %v982
        %1111 = vmatprep.subr.mxu0 0.0
        %1112 = vmatpush1.msra.mxu0 %v981
        %1113 = vmatprep.subr.mxu0 0.0
        %1114 = vmatpush1.msra.mxu0 %v980
        %1115 = vmatprep.subr.mxu0 0.0
        %1116 = vmatpush2.msra.mxu0 0.0
        %1117 = vmatprep.subr.mxu0 0.0
        %1118 = vmatpush2.msra.mxu0 0.0
        %1119 = vmatprep.subr.mxu0 0.0
        %1120 = vmatpush2.msra.mxu0 0.0
        %1121 = vmatprep.subr.mxu0 0.0
        %1122 = vmatpush2.msra.mxu0 0.0
        %1123 = vmatprep.subr.mxu0 0.0
        %1124 = vmatpush2.msra.mxu0 0.0
        %1125 = vmatprep.subr.mxu0 0.0
        %1126 = vmatpush2.msra.mxu0 0.0
        %1127 = vmatprep.subr.mxu0 0.0
        %1128 = vmatpush2.msra.mxu0 0.0
        %1129 = vmatprep.subr.mxu0 0.0
        %1130 = vmatpush2.msra.mxu0 0.0
        %1131 = vmatprep.subr.mxu0 0.0
        %1132 = vmatpush2.msra.mxu0 0.0
        %1133 = vmatprep.subr.mxu0 0.0
        %1134 = vmatpush2.msra.mxu0 0.0
        %1135 = vmatprep.subr.mxu0 0.0
        %1136 = vmatpush2.msra.mxu0 0.0
        %1137 = vmatprep.subr.mxu0 0.0
        %1138 = vmatpush2.msra.mxu0 0.0
        %1139 = vmatprep.subr.mxu0 0.0
        %1140 = vmatpush2.msra.mxu0 0.0
        %1141 = vmatprep.subr.mxu0 0.0
        %1142 = vmatpush2.msra.mxu0 0.0
        %1143 = vmatprep.subr.mxu0 0.0
        %1144 = vmatpush2.msra.mxu0 0.0
        %1145 = vmatprep.subr.mxu0 0.0
        %1146 = vmatpush2.msra.mxu0 0.0
        %1147 = vmatprep.mubr.f32.mxu0 0.0
        %1148 = vmatmul.mubr.f32.gmra.mxu0 %v928
        %v1149 = vpop.f32.mrf.mxu0
        %v1150 = vadd.f32 %v1080, %v1149
        %v1151 = vpop.f32.mrf.mxu0
        %1152 = vdwg.mxu0
        %v1154 = vlaneseq
        %v1155 = vshrl.u32 %v1154, 7
        %v1156 = vsub.s32 0, %v1155
        %v1157 = vrot.slane %v1012, %v1156
        %v1159 = vadd.f32 %v1150, %v1157
        %v1160 = vmax.f32 %v1159, 0.0
        %1161 = vmatprep.subr.mxu0 0.0
        %1162 = vmatpush1.msra.mxu0 %v1011
        %1163 = vmatprep.subr.mxu0 0.0
        %1164 = vmatpush1.msra.mxu0 %v1010
        %1165 = vmatprep.subr.mxu0 0.0
        %1166 = vmatpush1.msra.mxu0 %v1009
        %1167 = vmatprep.subr.mxu0 0.0
        %1168 = vmatpush1.msra.mxu0 %v1008
        %1169 = vmatprep.subr.mxu0 0.0
        %1170 = vmatpush1.msra.mxu0 %v1007
        %1171 = vmatprep.subr.mxu0 0.0
        %1172 = vmatpush1.msra.mxu0 %v1006
        %1173 = vmatprep.subr.mxu0 0.0
        %1174 = vmatpush1.msra.mxu0 %v1005
        %1175 = vmatprep.subr.mxu0 0.0
        %1176 = vmatpush1.msra.mxu0 %v1004
        %1177 = vmatprep.subr.mxu0 0.0
        %1178 = vmatpush1.msra.mxu0 %v1003
        %1179 = vmatprep.subr.mxu0 0.0
        %1180 = vmatpush1.msra.mxu0 %v1002
        %1181 = vmatprep.subr.mxu0 0.0
        %1182 = vmatpush1.msra.mxu0 %v1001
        %1183 = vmatprep.subr.mxu0 0.0
        %1184 = vmatpush1.msra.mxu0 %v1000
        %1185 = vmatprep.subr.mxu0 0.0
        %1186 = vmatpush1.msra.mxu0 %v999
        %1187 = vmatprep.subr.mxu0 0.0
        %1188 = vmatpush1.msra.mxu0 %v998
        %1189 = vmatprep.subr.mxu0 0.0
        %1190 = vmatpush1.msra.mxu0 %v997
        %1191 = vmatprep.subr.mxu0 0.0
        %1192 = vmatpush1.msra.mxu0 %v996
        %1193 = vmatprep.subr.mxu0 0.0
        %1194 = vmatpush2.msra.mxu0 0.0
        %1195 = vmatprep.subr.mxu0 0.0
        %1196 = vmatpush2.msra.mxu0 0.0
        %1197 = vmatprep.subr.mxu0 0.0
        %1198 = vmatpush2.msra.mxu0 0.0
        %1199 = vmatprep.subr.mxu0 0.0
        %1200 = vmatpush2.msra.mxu0 0.0
        %1201 = vmatprep.subr.mxu0 0.0
        %1202 = vmatpush2.msra.mxu0 0.0
        %1203 = vmatprep.subr.mxu0 0.0
        %1204 = vmatpush2.msra.mxu0 0.0
        %1205 = vmatprep.subr.mxu0 0.0
        %1206 = vmatpush2.msra.mxu0 0.0
        %1207 = vmatprep.subr.mxu0 0.0
        %1208 = vmatpush2.msra.mxu0 0.0
        %1209 = vmatprep.subr.mxu0 0.0
        %1210 = vmatpush2.msra.mxu0 0.0
        %1211 = vmatprep.subr.mxu0 0.0
        %1212 = vmatpush2.msra.mxu0 0.0
        %1213 = vmatprep.subr.mxu0 0.0
        %1214 = vmatpush2.msra.mxu0 0.0
        %1215 = vmatprep.subr.mxu0 0.0
        %1216 = vmatpush2.msra.mxu0 0.0
        %1217 = vmatprep.subr.mxu0 0.0
        %1218 = vmatpush2.msra.mxu0 0.0
        %1219 = vmatprep.subr.mxu0 0.0
        %1220 = vmatpush2.msra.mxu0 0.0
        %1221 = vmatprep.subr.mxu0 0.0
        %1222 = vmatpush2.msra.mxu0 0.0
        %1223 = vmatprep.subr.mxu0 0.0
        %1224 = vmatpush2.msra.mxu0 0.0
        %1225 = vmatprep.mubr.f32.mxu0 0.0
        %1226 = vmatmul.mubr.f32.gmra.mxu0 %v594
        %v1227 = vpop.f32.mrf.mxu0
        %v1228 = vadd.f32 0.0, %v1227
        %v1229 = vpop.f32.mrf.mxu0
        %1230 = vdwg.mxu0
        %1231 = vmatprep.subr.mxu0 0.0
        %1232 = vmatpush1.msra.mxu0 %v995
        %1233 = vmatprep.subr.mxu0 0.0
        %1234 = vmatpush1.msra.mxu0 %v994
        %1235 = vmatprep.subr.mxu0 0.0
        %1236 = vmatpush1.msra.mxu0 %v993
        %1237 = vmatprep.subr.mxu0 0.0
        %1238 = vmatpush1.msra.mxu0 %v992
        %1239 = vmatprep.subr.mxu0 0.0
        %1240 = vmatpush1.msra.mxu0 %v991
        %1241 = vmatprep.subr.mxu0 0.0
        %1242 = vmatpush1.msra.mxu0 %v990
        %1243 = vmatprep.subr.mxu0 0.0
        %1244 = vmatpush1.msra.mxu0 %v989
        %1245 = vmatprep.subr.mxu0 0.0
        %1246 = vmatpush1.msra.mxu0 %v988
        %1247 = vmatprep.subr.mxu0 0.0
        %1248 = vmatpush1.msra.mxu0 %v987
        %1249 = vmatprep.subr.mxu0 0.0
        %1250 = vmatpush1.msra.mxu0 %v986
        %1251 = vmatprep.subr.mxu0 0.0
        %1252 = vmatpush1.msra.mxu0 %v985
        %1253 = vmatprep.subr.mxu0 0.0
        %1254 = vmatpush1.msra.mxu0 %v984
        %1255 = vmatprep.subr.mxu0 0.0
        %1256 = vmatpush1.msra.mxu0 %v983
        %1257 = vmatprep.subr.mxu0 0.0
        %1258 = vmatpush1.msra.mxu0 %v982
        %1259 = vmatprep.subr.mxu0 0.0
        %1260 = vmatpush1.msra.mxu0 %v981
        %1261 = vmatprep.subr.mxu0 0.0
        %1262 = vmatpush1.msra.mxu0 %v980
        %1263 = vmatprep.subr.mxu0 0.0
        %1264 = vmatpush2.msra.mxu0 0.0
        %1265 = vmatprep.subr.mxu0 0.0
        %1266 = vmatpush2.msra.mxu0 0.0
        %1267 = vmatprep.subr.mxu0 0.0
        %1268 = vmatpush2.msra.mxu0 0.0
        %1269 = vmatprep.subr.mxu0 0.0
        %1270 = vmatpush2.msra.mxu0 0.0
        %1271 = vmatprep.subr.mxu0 0.0
        %1272 = vmatpush2.msra.mxu0 0.0
        %1273 = vmatprep.subr.mxu0 0.0
        %1274 = vmatpush2.msra.mxu0 0.0
        %1275 = vmatprep.subr.mxu0 0.0
        %1276 = vmatpush2.msra.mxu0 0.0
        %1277 = vmatprep.subr.mxu0 0.0
        %1278 = vmatpush2.msra.mxu0 0.0
        %1279 = vmatprep.subr.mxu0 0.0
        %1280 = vmatpush2.msra.mxu0 0.0
        %1281 = vmatprep.subr.mxu0 0.0
        %1282 = vmatpush2.msra.mxu0 0.0
        %1283 = vmatprep.subr.mxu0 0.0
        %1284 = vmatpush2.msra.mxu0 0.0
        %1285 = vmatprep.subr.mxu0 0.0
        %1286 = vmatpush2.msra.mxu0 0.0
        %1287 = vmatprep.subr.mxu0 0.0
        %1288 = vmatpush2.msra.mxu0 0.0
        %1289 = vmatprep.subr.mxu0 0.0
        %1290 = vmatpush2.msra.mxu0 0.0
        %1291 = vmatprep.subr.mxu0 0.0
        %1292 = vmatpush2.msra.mxu0 0.0
        %1293 = vmatprep.subr.mxu0 0.0
        %1294 = vmatpush2.msra.mxu0 0.0
        %1295 = vmatprep.mubr.f32.mxu0 0.0
        %1296 = vmatmul.mubr.f32.gmra.mxu0 %v975
        %v1297 = vpop.f32.mrf.mxu0
        %v1298 = vadd.f32 %v1228, %v1297
        %v1299 = vpop.f32.mrf.mxu0
        %1300 = vdwg.mxu0
        %v1301 = vadd.f32 %v1298, %v1157
        %v1302 = vmax.f32 %v1301, 0.0
        %v1304 = vsel %vm814, 1.0, 0
        %1306 = vmatprep.subr.mxu0 0.0
        %1307 = vmatpush1.msra.mxu0 0.0
        %1308 = vmatprep.subr.mxu0 0.0
        %1309 = vmatpush1.msra.mxu0 0.0
        %1310 = vmatprep.subr.mxu0 0.0
        %1311 = vmatpush1.msra.mxu0 0.0
        %1312 = vmatprep.subr.mxu0 0.0
        %1313 = vmatpush1.msra.mxu0 0.0
        %1314 = vmatprep.subr.mxu0 0.0
        %1315 = vmatpush1.msra.mxu0 0.0
        %1316 = vmatprep.subr.mxu0 0.0
        %1317 = vmatpush1.msra.mxu0 0.0
        %1318 = vmatprep.subr.mxu0 0.0
        %1319 = vmatpush1.msra.mxu0 0.0
        %1320 = vmatprep.subr.mxu0 0.0
        %1321 = vmatpush1.msra.mxu0 0.0
        %1322 = vmatprep.subr.mxu0 0.0
        %1323 = vmatpush1.msra.mxu0 0.0
        %1324 = vmatprep.subr.mxu0 0.0
        %1325 = vmatpush1.msra.mxu0 0.0
        %1326 = vmatprep.subr.mxu0 0.0
        %1327 = vmatpush1.msra.mxu0 0.0
        %1328 = vmatprep.subr.mxu0 0.0
        %1329 = vmatpush1.msra.mxu0 0.0
        %1330 = vmatprep.subr.mxu0 0.0
        %1331 = vmatpush1.msra.mxu0 0.0
        %1332 = vmatprep.subr.mxu0 0.0
        %1333 = vmatpush1.msra.mxu0 0.0
        %1334 = vmatprep.subr.mxu0 0.0
        %1335 = vmatpush1.msra.mxu0 0.0
        %1336 = vmatprep.subr.mxu0 0.0
        %1337 = vmatpush1.msra.mxu0 %v1160
        %1338 = vmatprep.subr.mxu0 0.0
        %1339 = vmatpush2.msra.mxu0 0.0
        %1340 = vmatprep.subr.mxu0 0.0
        %1341 = vmatpush2.msra.mxu0 0.0
        %1342 = vmatprep.subr.mxu0 0.0
        %1343 = vmatpush2.msra.mxu0 0.0
        %1344 = vmatprep.subr.mxu0 0.0
        %1345 = vmatpush2.msra.mxu0 0.0
        %1346 = vmatprep.subr.mxu0 0.0
        %1347 = vmatpush2.msra.mxu0 0.0
        %1348 = vmatprep.subr.mxu0 0.0
        %1349 = vmatpush2.msra.mxu0 0.0
        %1350 = vmatprep.subr.mxu0 0.0
        %1351 = vmatpush2.msra.mxu0 0.0
        %1352 = vmatprep.subr.mxu0 0.0
        %1353 = vmatpush2.msra.mxu0 0.0
        %1354 = vmatprep.subr.mxu0 0.0
        %1355 = vmatpush2.msra.mxu0 0.0
        %1356 = vmatprep.subr.mxu0 0.0
        %1357 = vmatpush2.msra.mxu0 0.0
        %1358 = vmatprep.subr.mxu0 0.0
        %1359 = vmatpush2.msra.mxu0 0.0
        %1360 = vmatprep.subr.mxu0 0.0
        %1361 = vmatpush2.msra.mxu0 0.0
        %1362 = vmatprep.subr.mxu0 0.0
        %1363 = vmatpush2.msra.mxu0 0.0
        %1364 = vmatprep.subr.mxu0 0.0
        %1365 = vmatpush2.msra.mxu0 0.0
        %1366 = vmatprep.subr.mxu0 0.0
        %1367 = vmatpush2.msra.mxu0 0.0
        %1368 = vmatprep.subr.mxu0 0.0
        %1369 = vmatpush2.msra.mxu0 0.0
        %1370 = vmatprep.mubr.f32.mxu0 0.0
        %1371 = vmatmul.mubr.f32.gmra.mxu0 %v1304
        %v1372 = vpop.f32.mrf.mxu0
        %v1373 = vadd.f32 0.0, %v1372
        %v1374 = vpop.f32.mrf.mxu0
        %1375 = vdwg.mxu0
        %1376 = vmatprep.subr.mxu0 0.0
        %1377 = vmatpush1.msra.mxu0 0.0
        %1378 = vmatprep.subr.mxu0 0.0
        %1379 = vmatpush1.msra.mxu0 0.0
        %1380 = vmatprep.subr.mxu0 0.0
        %1381 = vmatpush1.msra.mxu0 0.0
        %1382 = vmatprep.subr.mxu0 0.0
        %1383 = vmatpush1.msra.mxu0 0.0
        %1384 = vmatprep.subr.mxu0 0.0
        %1385 = vmatpush1.msra.mxu0 0.0
        %1386 = vmatprep.subr.mxu0 0.0
        %1387 = vmatpush1.msra.mxu0 0.0
        %1388 = vmatprep.subr.mxu0 0.0
        %1389 = vmatpush1.msra.mxu0 0.0
        %1390 = vmatprep.subr.mxu0 0.0
        %1391 = vmatpush1.msra.mxu0 0.0
        %1392 = vmatprep.subr.mxu0 0.0
        %1393 = vmatpush1.msra.mxu0 0.0
        %1394 = vmatprep.subr.mxu0 0.0
        %1395 = vmatpush1.msra.mxu0 0.0
        %1396 = vmatprep.subr.mxu0 0.0
        %1397 = vmatpush1.msra.mxu0 0.0
        %1398 = vmatprep.subr.mxu0 0.0
        %1399 = vmatpush1.msra.mxu0 0.0
        %1400 = vmatprep.subr.mxu0 0.0
        %1401 = vmatpush1.msra.mxu0 0.0
        %1402 = vmatprep.subr.mxu0 0.0
        %1403 = vmatpush1.msra.mxu0 0.0
        %1404 = vmatprep.subr.mxu0 0.0
        %1405 = vmatpush1.msra.mxu0 0.0
        %1406 = vmatprep.subr.mxu0 0.0
        %1407 = vmatpush1.msra.mxu0 %v1302
        %1408 = vmatprep.subr.mxu0 0.0
        %1409 = vmatpush2.msra.mxu0 0.0
        %1410 = vmatprep.subr.mxu0 0.0
        %1411 = vmatpush2.msra.mxu0 0.0
        %1412 = vmatprep.subr.mxu0 0.0
        %1413 = vmatpush2.msra.mxu0 0.0
        %1414 = vmatprep.subr.mxu0 0.0
        %1415 = vmatpush2.msra.mxu0 0.0
        %1416 = vmatprep.subr.mxu0 0.0
        %1417 = vmatpush2.msra.mxu0 0.0
        %1418 = vmatprep.subr.mxu0 0.0
        %1419 = vmatpush2.msra.mxu0 0.0
        %1420 = vmatprep.subr.mxu0 0.0
        %1421 = vmatpush2.msra.mxu0 0.0
        %1422 = vmatprep.subr.mxu0 0.0
        %1423 = vmatpush2.msra.mxu0 0.0
        %1424 = vmatprep.subr.mxu0 0.0
        %1425 = vmatpush2.msra.mxu0 0.0
        %1426 = vmatprep.subr.mxu0 0.0
        %1427 = vmatpush2.msra.mxu0 0.0
        %1428 = vmatprep.subr.mxu0 0.0
        %1429 = vmatpush2.msra.mxu0 0.0
        %1430 = vmatprep.subr.mxu0 0.0
        %1431 = vmatpush2.msra.mxu0 0.0
        %1432 = vmatprep.subr.mxu0 0.0
        %1433 = vmatpush2.msra.mxu0 0.0
        %1434 = vmatprep.subr.mxu0 0.0
        %1435 = vmatpush2.msra.mxu0 0.0
        %1436 = vmatprep.subr.mxu0 0.0
        %1437 = vmatpush2.msra.mxu0 0.0
        %1438 = vmatprep.subr.mxu0 0.0
        %1439 = vmatpush2.msra.mxu0 0.0
        %1440 = vmatprep.mubr.f32.mxu0 0.0
        %1441 = vmatmul.mubr.f32.gmra.mxu0 %v1304
        %v1442 = vpop.f32.mrf.mxu0
        %v1443 = vadd.f32 0.0, %v1442
        %v1444 = vpop.f32.mrf.mxu0
        %1445 = vdwg.mxu0
        %v1446 = vmul.f32 %v1373, %v1443
        %v1447 = vsub.f32 %v1373, %v1443
        %v1448 = vld [vmem:[#allocation11] sm:$0xff]
        %v1449 = vld [vmem:[#allocation11 + $0x8] sm:$0xff]
        %v1450 = vld [vmem:[#allocation11 + $0x10] sm:$0xff]
        %v1451 = vld [vmem:[#allocation11 + $0x18] sm:$0xff]
        %v1452 = vld [vmem:[#allocation11 + $0x20] sm:$0xff]
        %v1453 = vld [vmem:[#allocation11 + $0x28] sm:$0xff]
        %v1454 = vld [vmem:[#allocation11 + $0x30] sm:$0xff]
        %v1455 = vld [vmem:[#allocation11 + $0x38] sm:$0xff]
        %v1456 = vld [vmem:[#allocation11 + $0x40] sm:$0xff]
        %v1457 = vld [vmem:[#allocation11 + $0x48] sm:$0xff]
        %v1458 = vld [vmem:[#allocation11 + $0x50] sm:$0xff]
        %v1459 = vld [vmem:[#allocation11 + $0x58] sm:$0xff]
        %v1460 = vld [vmem:[#allocation11 + $0x60] sm:$0xff]
        %v1461 = vld [vmem:[#allocation11 + $0x68] sm:$0xff]
        %v1462 = vld [vmem:[#allocation11 + $0x70] sm:$0xff]
        %v1463 = vld [vmem:[#allocation11 + $0x78] sm:$0xff]
        %v1464 = vld [vmem:[#allocation11 + $0x80] sm:$0xff]
        %v1465 = vld [vmem:[#allocation11 + $0x88] sm:$0xff]
        %v1466 = vld [vmem:[#allocation11 + $0x90] sm:$0xff]
        %v1467 = vld [vmem:[#allocation11 + $0x98] sm:$0xff]
        %v1468 = vld [vmem:[#allocation11 + $0xa0] sm:$0xff]
        %v1469 = vld [vmem:[#allocation11 + $0xa8] sm:$0xff]
        %v1470 = vld [vmem:[#allocation11 + $0xb0] sm:$0xff]
        %v1471 = vld [vmem:[#allocation11 + $0xb8] sm:$0xff]
        %v1472 = vld [vmem:[#allocation11 + $0xc0] sm:$0xff]
        %v1473 = vld [vmem:[#allocation11 + $0xc8] sm:$0xff]
        %v1474 = vld [vmem:[#allocation11 + $0xd0] sm:$0xff]
        %v1475 = vld [vmem:[#allocation11 + $0xd8] sm:$0xff]
        %v1476 = vld [vmem:[#allocation11 + $0xe0] sm:$0xff]
        %v1477 = vld [vmem:[#allocation11 + $0xe8] sm:$0xff]
        %v1478 = vld [vmem:[#allocation11 + $0xf0] sm:$0xff]
        %v1479 = vld [vmem:[#allocation11 + $0xf8] sm:$0xff]
        %v1480 = vld [vmem:[#allocation11 + $0x100] sm:$0xff]
        %v1481 = vld [vmem:[#allocation11 + $0x108] sm:$0xff]
        %v1482 = vld [vmem:[#allocation11 + $0x110] sm:$0xff]
        %v1483 = vld [vmem:[#allocation11 + $0x118] sm:$0xff]
        %v1484 = vld [vmem:[#allocation11 + $0x120] sm:$0xff]
        %v1485 = vld [vmem:[#allocation11 + $0x128] sm:$0xff]
        %v1486 = vld [vmem:[#allocation11 + $0x130] sm:$0xff]
        %v1487 = vld [vmem:[#allocation11 + $0x138] sm:$0xff]
        %v1488 = vld [vmem:[#allocation11 + $0x140] sm:$0xff]
        %v1489 = vld [vmem:[#allocation11 + $0x148] sm:$0xff]
        %v1490 = vld [vmem:[#allocation11 + $0x150] sm:$0xff]
        %v1491 = vld [vmem:[#allocation11 + $0x158] sm:$0xff]
        %v1492 = vld [vmem:[#allocation11 + $0x160] sm:$0xff]
        %v1493 = vld [vmem:[#allocation11 + $0x168] sm:$0xff]
        %v1494 = vld [vmem:[#allocation11 + $0x170] sm:$0xff]
        %v1495 = vld [vmem:[#allocation11 + $0x178] sm:$0xff]
        %v1496 = vld [vmem:[#allocation11 + $0x180] sm:$0xff]
        %v1497 = vld [vmem:[#allocation11 + $0x188] sm:$0xff]
        %v1498 = vld [vmem:[#allocation11 + $0x190] sm:$0xff]
        %v1499 = vld [vmem:[#allocation11 + $0x198] sm:$0xff]
        %v1500 = vld [vmem:[#allocation11 + $0x1a0] sm:$0xff]
        %v1501 = vld [vmem:[#allocation11 + $0x1a8] sm:$0xff]
        %v1502 = vld [vmem:[#allocation11 + $0x1b0] sm:$0xff]
        %v1503 = vld [vmem:[#allocation11 + $0x1b8] sm:$0xff]
        %v1504 = vld [vmem:[#allocation11 + $0x1c0] sm:$0xff]
        %v1505 = vld [vmem:[#allocation11 + $0x1c8] sm:$0xff]
        %v1506 = vld [vmem:[#allocation11 + $0x1d0] sm:$0xff]
        %v1507 = vld [vmem:[#allocation11 + $0x1d8] sm:$0xff]
        %v1508 = vld [vmem:[#allocation11 + $0x1e0] sm:$0xff]
        %v1509 = vld [vmem:[#allocation11 + $0x1e8] sm:$0xff]
        %v1510 = vld [vmem:[#allocation11 + $0x1f0] sm:$0xff]
        %v1511 = vld [vmem:[#allocation11 + $0x1f8] sm:$0xff]
        %v1512 = vld [vmem:[%s10] sm:$0x1]
        %1513 = vmatprep.subr.mxu0 0.0
        %1514 = vmatpush1.msra.mxu0 %v1463
        %1515 = vmatprep.subr.mxu0 0.0
        %1516 = vmatpush1.msra.mxu0 %v1462
        %1517 = vmatprep.subr.mxu0 0.0
        %1518 = vmatpush1.msra.mxu0 %v1461
        %1519 = vmatprep.subr.mxu0 0.0
        %1520 = vmatpush1.msra.mxu0 %v1460
        %1521 = vmatprep.subr.mxu0 0.0
        %1522 = vmatpush1.msra.mxu0 %v1459
        %1523 = vmatprep.subr.mxu0 0.0
        %1524 = vmatpush1.msra.mxu0 %v1458
        %1525 = vmatprep.subr.mxu0 0.0
        %1526 = vmatpush1.msra.mxu0 %v1457
        %1527 = vmatprep.subr.mxu0 0.0
        %1528 = vmatpush1.msra.mxu0 %v1456
        %1529 = vmatprep.subr.mxu0 0.0
        %1530 = vmatpush1.msra.mxu0 %v1455
        %1531 = vmatprep.subr.mxu0 0.0
        %1532 = vmatpush1.msra.mxu0 %v1454
        %1533 = vmatprep.subr.mxu0 0.0
        %1534 = vmatpush1.msra.mxu0 %v1453
        %1535 = vmatprep.subr.mxu0 0.0
        %1536 = vmatpush1.msra.mxu0 %v1452
        %1537 = vmatprep.subr.mxu0 0.0
        %1538 = vmatpush1.msra.mxu0 %v1451
        %1539 = vmatprep.subr.mxu0 0.0
        %1540 = vmatpush1.msra.mxu0 %v1450
        %1541 = vmatprep.subr.mxu0 0.0
        %1542 = vmatpush1.msra.mxu0 %v1449
        %1543 = vmatprep.subr.mxu0 0.0
        %1544 = vmatpush1.msra.mxu0 %v1448
        %1545 = vmatprep.subr.mxu0 0.0
        %1546 = vmatpush2.msra.mxu0 %v1479
        %1547 = vmatprep.subr.mxu0 0.0
        %1548 = vmatpush2.msra.mxu0 %v1478
        %1549 = vmatprep.subr.mxu0 0.0
        %1550 = vmatpush2.msra.mxu0 %v1477
        %1551 = vmatprep.subr.mxu0 0.0
        %1552 = vmatpush2.msra.mxu0 %v1476
        %1553 = vmatprep.subr.mxu0 0.0
        %1554 = vmatpush2.msra.mxu0 %v1475
        %1555 = vmatprep.subr.mxu0 0.0
        %1556 = vmatpush2.msra.mxu0 %v1474
        %1557 = vmatprep.subr.mxu0 0.0
        %1558 = vmatpush2.msra.mxu0 %v1473
        %1559 = vmatprep.subr.mxu0 0.0
        %1560 = vmatpush2.msra.mxu0 %v1472
        %1561 = vmatprep.subr.mxu0 0.0
        %1562 = vmatpush2.msra.mxu0 %v1471
        %1563 = vmatprep.subr.mxu0 0.0
        %1564 = vmatpush2.msra.mxu0 %v1470
        %1565 = vmatprep.subr.mxu0 0.0
        %1566 = vmatpush2.msra.mxu0 %v1469
        %1567 = vmatprep.subr.mxu0 0.0
        %1568 = vmatpush2.msra.mxu0 %v1468
        %1569 = vmatprep.subr.mxu0 0.0
        %1570 = vmatpush2.msra.mxu0 %v1467
        %1571 = vmatprep.subr.mxu0 0.0
        %1572 = vmatpush2.msra.mxu0 %v1466
        %1573 = vmatprep.subr.mxu0 0.0
        %1574 = vmatpush2.msra.mxu0 %v1465
        %1575 = vmatprep.subr.mxu0 0.0
        %1576 = vmatpush2.msra.mxu0 %v1464
        %1577 = vmatprep.mubr.f32.mxu0 %v1443
        %1578 = vmatmul.mubr.f32.gmra.mxu0 %v1373
        %v1579 = vpop.f32.mrf.mxu0
        %v1580 = vadd.f32 %v1512, %v1579
        %v1581 = vpop.f32.mrf.mxu0
        %1582 = vdwg.mxu0
        %1583 = vmatprep.subr.mxu0 0.0
        %1584 = vmatpush1.msra.mxu0 %v1495
        %1585 = vmatprep.subr.mxu0 0.0
        %1586 = vmatpush1.msra.mxu0 %v1494
        %1587 = vmatprep.subr.mxu0 0.0
        %1588 = vmatpush1.msra.mxu0 %v1493
        %1589 = vmatprep.subr.mxu0 0.0
        %1590 = vmatpush1.msra.mxu0 %v1492
        %1591 = vmatprep.subr.mxu0 0.0
        %1592 = vmatpush1.msra.mxu0 %v1491
        %1593 = vmatprep.subr.mxu0 0.0
        %1594 = vmatpush1.msra.mxu0 %v1490
        %1595 = vmatprep.subr.mxu0 0.0
        %1596 = vmatpush1.msra.mxu0 %v1489
        %1597 = vmatprep.subr.mxu0 0.0
        %1598 = vmatpush1.msra.mxu0 %v1488
        %1599 = vmatprep.subr.mxu0 0.0
        %1600 = vmatpush1.msra.mxu0 %v1487
        %1601 = vmatprep.subr.mxu0 0.0
        %1602 = vmatpush1.msra.mxu0 %v1486
        %1603 = vmatprep.subr.mxu0 0.0
        %1604 = vmatpush1.msra.mxu0 %v1485
        %1605 = vmatprep.subr.mxu0 0.0
        %1606 = vmatpush1.msra.mxu0 %v1484
        %1607 = vmatprep.subr.mxu0 0.0
        %1608 = vmatpush1.msra.mxu0 %v1483
        %1609 = vmatprep.subr.mxu0 0.0
        %1610 = vmatpush1.msra.mxu0 %v1482
        %1611 = vmatprep.subr.mxu0 0.0
        %1612 = vmatpush1.msra.mxu0 %v1481
        %1613 = vmatprep.subr.mxu0 0.0
        %1614 = vmatpush1.msra.mxu0 %v1480
        %1615 = vmatprep.subr.mxu0 0.0
        %1616 = vmatpush2.msra.mxu0 %v1511
        %1617 = vmatprep.subr.mxu0 0.0
        %1618 = vmatpush2.msra.mxu0 %v1510
        %1619 = vmatprep.subr.mxu0 0.0
        %1620 = vmatpush2.msra.mxu0 %v1509
        %1621 = vmatprep.subr.mxu0 0.0
        %1622 = vmatpush2.msra.mxu0 %v1508
        %1623 = vmatprep.subr.mxu0 0.0
        %1624 = vmatpush2.msra.mxu0 %v1507
        %1625 = vmatprep.subr.mxu0 0.0
        %1626 = vmatpush2.msra.mxu0 %v1506
        %1627 = vmatprep.subr.mxu0 0.0
        %1628 = vmatpush2.msra.mxu0 %v1505
        %1629 = vmatprep.subr.mxu0 0.0
        %1630 = vmatpush2.msra.mxu0 %v1504
        %1631 = vmatprep.subr.mxu0 0.0
        %1632 = vmatpush2.msra.mxu0 %v1503
        %1633 = vmatprep.subr.mxu0 0.0
        %1634 = vmatpush2.msra.mxu0 %v1502
        %1635 = vmatprep.subr.mxu0 0.0
        %1636 = vmatpush2.msra.mxu0 %v1501
        %1637 = vmatprep.subr.mxu0 0.0
        %1638 = vmatpush2.msra.mxu0 %v1500
        %1639 = vmatprep.subr.mxu0 0.0
        %1640 = vmatpush2.msra.mxu0 %v1499
        %1641 = vmatprep.subr.mxu0 0.0
        %1642 = vmatpush2.msra.mxu0 %v1498
        %1643 = vmatprep.subr.mxu0 0.0
        %1644 = vmatpush2.msra.mxu0 %v1497
        %1645 = vmatprep.subr.mxu0 0.0
        %1646 = vmatpush2.msra.mxu0 %v1496
        %1647 = vmatprep.mubr.f32.mxu0 %v1447
        %1648 = vmatmul.mubr.f32.gmra.mxu0 %v1446
        %v1649 = vpop.f32.mrf.mxu0
        %v1650 = vadd.f32 %v1580, %v1649
        %v1651 = vpop.f32.mrf.mxu0
        %1652 = vdwg.mxu0
        %v1653 = vmax.f32 %v1650, 0.0
        %v1654 = vld [vmem:[#allocation13] sm:$0xff]
        %v1655 = vld [vmem:[#allocation13 + $0x8] sm:$0xff]
        %v1656 = vld [vmem:[#allocation13 + $0x10] sm:$0xff]
        %v1657 = vld [vmem:[#allocation13 + $0x18] sm:$0xff]
        %v1658 = vld [vmem:[#allocation13 + $0x20] sm:$0xff]
        %v1659 = vld [vmem:[#allocation13 + $0x28] sm:$0xff]
        %v1660 = vld [vmem:[#allocation13 + $0x30] sm:$0xff]
        %v1661 = vld [vmem:[#allocation13 + $0x38] sm:$0xff]
        %v1662 = vld [vmem:[#allocation13 + $0x40] sm:$0xff]
        %v1663 = vld [vmem:[#allocation13 + $0x48] sm:$0xff]
        %v1664 = vld [vmem:[#allocation13 + $0x50] sm:$0xff]
        %v1665 = vld [vmem:[#allocation13 + $0x58] sm:$0xff]
        %v1666 = vld [vmem:[#allocation13 + $0x60] sm:$0xff]
        %v1667 = vld [vmem:[#allocation13 + $0x68] sm:$0xff]
        %v1668 = vld [vmem:[#allocation13 + $0x70] sm:$0xff]
        %v1669 = vld [vmem:[#allocation13 + $0x78] sm:$0xff]
        %v1670 = vld [vmem:[%s12] sm:$0x1]
        %1671 = vmatprep.subr.mxu0 0.0
        %1672 = vmatpush1.msra.mxu0 %v1669
        %1673 = vmatprep.subr.mxu0 0.0
        %1674 = vmatpush1.msra.mxu0 %v1668
        %1675 = vmatprep.subr.mxu0 0.0
        %1676 = vmatpush1.msra.mxu0 %v1667
        %1677 = vmatprep.subr.mxu0 0.0
        %1678 = vmatpush1.msra.mxu0 %v1666
        %1679 = vmatprep.subr.mxu0 0.0
        %1680 = vmatpush1.msra.mxu0 %v1665
        %1681 = vmatprep.subr.mxu0 0.0
        %1682 = vmatpush1.msra.mxu0 %v1664
        %1683 = vmatprep.subr.mxu0 0.0
        %1684 = vmatpush1.msra.mxu0 %v1663
        %1685 = vmatprep.subr.mxu0 0.0
        %1686 = vmatpush1.msra.mxu0 %v1662
        %1687 = vmatprep.subr.mxu0 0.0
        %1688 = vmatpush1.msra.mxu0 %v1661
        %1689 = vmatprep.subr.mxu0 0.0
        %1690 = vmatpush1.msra.mxu0 %v1660
        %1691 = vmatprep.subr.mxu0 0.0
        %1692 = vmatpush1.msra.mxu0 %v1659
        %1693 = vmatprep.subr.mxu0 0.0
        %1694 = vmatpush1.msra.mxu0 %v1658
        %1695 = vmatprep.subr.mxu0 0.0
        %1696 = vmatpush1.msra.mxu0 %v1657
        %1697 = vmatprep.subr.mxu0 0.0
        %1698 = vmatpush1.msra.mxu0 %v1656
        %1699 = vmatprep.subr.mxu0 0.0
        %1700 = vmatpush1.msra.mxu0 %v1655
        %1701 = vmatprep.subr.mxu0 0.0
        %1702 = vmatpush1.msra.mxu0 %v1654
        %1703 = vmatprep.subr.mxu0 0.0
        %1704 = vmatpush2.msra.mxu0 0.0
        %1705 = vmatprep.subr.mxu0 0.0
        %1706 = vmatpush2.msra.mxu0 0.0
        %1707 = vmatprep.subr.mxu0 0.0
        %1708 = vmatpush2.msra.mxu0 0.0
        %1709 = vmatprep.subr.mxu0 0.0
        %1710 = vmatpush2.msra.mxu0 0.0
        %1711 = vmatprep.subr.mxu0 0.0
        %1712 = vmatpush2.msra.mxu0 0.0
        %1713 = vmatprep.subr.mxu0 0.0
        %1714 = vmatpush2.msra.mxu0 0.0
        %1715 = vmatprep.subr.mxu0 0.0
        %1716 = vmatpush2.msra.mxu0 0.0
        %1717 = vmatprep.subr.mxu0 0.0
        %1718 = vmatpush2.msra.mxu0 0.0
        %1719 = vmatprep.subr.mxu0 0.0
        %1720 = vmatpush2.msra.mxu0 0.0
        %1721 = vmatprep.subr.mxu0 0.0
        %1722 = vmatpush2.msra.mxu0 0.0
        %1723 = vmatprep.subr.mxu0 0.0
        %1724 = vmatpush2.msra.mxu0 0.0
        %1725 = vmatprep.subr.mxu0 0.0
        %1726 = vmatpush2.msra.mxu0 0.0
        %1727 = vmatprep.subr.mxu0 0.0
        %1728 = vmatpush2.msra.mxu0 0.0
        %1729 = vmatprep.subr.mxu0 0.0
        %1730 = vmatpush2.msra.mxu0 0.0
        %1731 = vmatprep.subr.mxu0 0.0
        %1732 = vmatpush2.msra.mxu0 0.0
        %1733 = vmatprep.subr.mxu0 0.0
        %1734 = vmatpush2.msra.mxu0 0.0
        %1735 = vmatprep.mubr.f32.mxu0 0.0
        %1736 = vmatmul.mubr.f32.gmra.mxu0 %v1653
        %v1737 = vpop.f32.mrf.mxu0
        %v1738 = vadd.f32 %v1670, %v1737
        %v1739 = vpop.f32.mrf.mxu0
        %1740 = vdwg.mxu0
        %1741 = vst [vmem:[%s585] sm:$0x1] %v1738
        %s1742 = sand.u32 %s336, 1
        %s1743 = scalar_lea.sflag [#allocation4], %s1742
        %s1744 = sand.u32 %s336, 1
        %s1745 = scalar_lea.vmem [#allocation14], %s1744
        // Predicated region
        $region101: #{tpu_custom_call.1} parent=71 // pred_check
          %p1746 = pneg %p346
        $region102: #{tpu_custom_call.1} parent=71 // pred_check_branch
          %1748 = sbr.rel (%p1746) target = $region104
        $region103: #{tpu_custom_call.1} parent=71 // pred_region
          %s1750 = ssub.s32 16, 16
          %1751 = vsyncadd %s1743, %s1750
          %s1752 = smul.addr %s35, 16
          %s1753 = scalar_lea.hbm %s13, %s1752
          %s1755 = sshll.u32 %s1745, 4
          %s1756 = int_to_ptr.vmem [resolvable:$true] %s1755
          %1758 = dma.vmem_to_hbm [thread:$0]  %s1756, 16, %s1753, %s1743
        $region104: #{tpu_custom_call.1} parent=71 // pred_fallthru
          _
      $region72: #{tpu_custom_call.1} parent=5 // pred_fallthru
        _
      %p1759 = scmp.le.s32.totalorder 2, %s30
      // Predicated region
      $region105: #{tpu_custom_call.1} parent=5 // pred_check
        %p1760 = pneg %p1759
      $region106: #{tpu_custom_call.1} parent=5 // pred_check_branch
        %1762 = sbr.rel (%p1760) target = $region108
      $region107: #{tpu_custom_call.1} parent=5 // pred_region
        %s1763 = ssub.s32 %s30, 2
        // Predicated region
        $region109: #{tpu_custom_call.1} parent=107 // pred_check
          %p1764 = pneg %p352
        $region110: #{tpu_custom_call.1} parent=107 // pred_check_branch
          %1766 = sbr.rel (%p1764) target = $region112
        $region111: #{tpu_custom_call.1} parent=107 // pred_region
          %s1767 = sand.u32 %s337, 1
          %s1768 = scalar_lea.sflag [#allocation4], %s1767
          %s1769 = sand.u32 %s337, 1
          %s1770 = scalar_lea.vmem [#allocation14], %s1769
          %1771 = dma.done %s1768, 16
        $region112: #{tpu_custom_call.1} parent=107 // pred_fallthru
          _
      $region108: #{tpu_custom_call.1} parent=5 // pred_fallthru
        _
    $region6: #{tpu_custom_call.1} parent=1 // loop_footer
      %s34 = sadd.s32 1, %s30
    $region7: #{tpu_custom_call.1} parent=1 // loop_footer_branch
      %29 = sbr.rel target = $region3
    $region8: #{tpu_custom_call.1} parent=1 // loop_exit
      _
    %1772 = vsyncpa [#allocation3], 1
    %s1773 = scalar_lea.sflag [#allocation3], 1
    %1774 = vsyncpa %s1773, 1
    %1775 = vsyncpa [#allocation6], 1
    %s1776 = scalar_lea.sflag [#allocation6], 1
    %1777 = vsyncpa %s1776, 1
    %1778 = vsyncpa [#allocation9], 1
    %1779 = vsyncpa [#allocation12], 1
    %1780 = vsyncpa [#allocation4], 1
    %s1781 = scalar_lea.sflag [#allocation4], 1
    %1782 = vsyncpa %s1781, 1

</llo_original>
